<compile_context>
chip_gen: v7x
topology: tpu7x:2x2x1
jax: 0.10.0
libtpu: 0.0.40
codegen_flags: <defaults>
</compile_context>

<pallas_src>
import jax
import jax.numpy as jnp
from jax import lax
from jax.experimental import pallas as pl
from jax.experimental.pallas import tpu as pltpu

_PREC = lax.Precision.HIGHEST       # true f32 MXU passes -> honest 1e-5 contract
_LANE_PATH_MIN_BATCH = 1024         # above this, switch to the lane-dense layout


def _round_up(x, m):
    return ((x + m - 1) // m) * m


# --------------------- small-batch kernel: batch-major --------------------------
def _mlp_kernel_bm(s_ref, a_ref, w1s_ref, w1a_ref, b1_ref, w2_ref, b2_ref, o_ref):
    # s: [B, sd], a: [B, ad], w1s: [sd, H], w1a: [ad, H], b1: [1, H]
    # w2: [H, d_out], b2: [1, d_out], o: [B, d_out]
    h = (
        jnp.dot(s_ref[...], w1s_ref[...], precision=_PREC,
                preferred_element_type=jnp.float32)
        + jnp.dot(a_ref[...], w1a_ref[...], precision=_PREC,
                  preferred_element_type=jnp.float32)
        + b1_ref[...]
    )
    h = jnp.maximum(h, 0.0)
    y = jnp.dot(h, w2_ref[...], precision=_PREC,
                preferred_element_type=jnp.float32) + b2_ref[...]
    o_ref[...] = y.astype(o_ref.dtype)


# ------------------ large-batch kernel: batch on the lane axis ------------------
def _mlp_kernel_lanes(st_ref, at_ref, w1s_t_ref, w1a_t_ref, b1_ref, w2_t_ref,
                      b2_ref, o_ref):
    # st: [sd, TB], at: [ad, TB] (batch = lanes, lane-dense)
    # w1s_t: [H, sd], w1a_t: [H, ad], b1: [H, 1]
    # w2_t: [d_out, H], b2: [d_out, 1], o: [d_out, TB]
    h = (
        jnp.dot(w1s_t_ref[...], st_ref[...], precision=_PREC,
                preferred_element_type=jnp.float32)
        + jnp.dot(w1a_t_ref[...], at_ref[...], precision=_PREC,
                  preferred_element_type=jnp.float32)
        + b1_ref[...]                      # [H,1] broadcasts along lanes (VPU splat)
    )
    h = jnp.maximum(h, 0.0)
    y = jnp.dot(w2_t_ref[...], h, precision=_PREC,
                preferred_element_type=jnp.float32) + b2_ref[...]
    o_ref[...] = y.astype(o_ref.dtype)


def prepare_params(w1, b1, w2, b2, state_dim):
    """One-time weight prep (call at model init, not per step).

    w1: [state_dim + action_dim, H] (transposed vs. PyTorch), b1: [H],
    w2: [H, state_dim], b2: [state_dim].
    """
    d_in, H = w1.shape
    d_out = w2.shape[1]
    w1_s, w1_a = w1[:state_dim], w1[state_dim:]
    return {
        # batch-major (small B) operands
        "w1_s": w1_s, "w1_a": w1_a,
        "b1_row": b1.reshape(1, H), "w2": w2, "b2_row": b2.reshape(1, d_out),
        # batch-on-lanes (large B) operands
        "w1s_t": jnp.transpose(w1_s), "w1a_t": jnp.transpose(w1_a),
        "b1_col": b1.reshape(H, 1), "w2_t": jnp.transpose(w2),
        "b2_col": b2.reshape(d_out, 1),
    }


def _forward_batch_major(state, action, p):
    B, sd = state.shape
    ad = action.shape[1]
    H = p["w1_s"].shape[1]
    d_out = p["w2"].shape[1]
    flops = 2 * B * ((sd + ad) * H + H * d_out)
    bytes_accessed = 4 * (B * (sd + ad + d_out) + (sd + ad) * H + H + H * d_out + d_out)
    return pl.pallas_call(
        _mlp_kernel_bm,
        out_shape=jax.ShapeDtypeStruct((B, d_out), state.dtype),
        grid_spec=pltpu.PrefetchScalarGridSpec(
            num_scalar_prefetch=0,
            grid=(1,),  # launch-overhead bound at this size; one full-array block
            in_specs=[
                pl.BlockSpec((B, sd), lambda i: (0, 0)),
                pl.BlockSpec((B, ad), lambda i: (0, 0)),
                pl.BlockSpec((sd, H), lambda i: (0, 0)),
                pl.BlockSpec((ad, H), lambda i: (0, 0)),
                pl.BlockSpec((1, H), lambda i: (0, 0)),
                pl.BlockSpec((H, d_out), lambda i: (0, 0)),
                pl.BlockSpec((1, d_out), lambda i: (0, 0)),
            ],
            out_specs=pl.BlockSpec((B, d_out), lambda i: (0, 0)),
        ),
        compiler_params=pltpu.CompilerParams(dimension_semantics=("arbitrary",)),
        cost_estimate=pl.CostEstimate(
            flops=flops, transcendentals=0, bytes_accessed=bytes_accessed),
    )(state, action, p["w1_s"], p["w1_a"], p["b1_row"], p["w2"], p["b2_row"])


def _forward_lane_major(state, action, p):
    B, sd = state.shape
    ad = action.shape[1]
    H = p["w1s_t"].shape[0]
    d_out = p["w2_t"].shape[0]

    # Lane tile: multiple of 128, >=2 grid steps (keeps both v7x TCs busy), capped at
    # 8192 (double-buffered tiles + the [H, tb] f32 intermediate stay ~3.5 MiB, well
    # inside the default scoped VMEM on v5e/v6e/v7x -> no vmem_limit_bytes needed).
    tb = max(128, min(8192, _round_up(pl.cdiv(B, 2), 128)))
    grid = (pl.cdiv(B, tb),)

    # Layout plumbing: put batch on the lane axis so every kernel operand is lane-dense
    # (unmasked vld/vst instead of masked stores on a width-8 output).
    st = jnp.transpose(state)    # [sd, B]
    at = jnp.transpose(action)   # [ad, B]

    flops = 2 * B * ((sd + ad) * H + H * d_out)
    bytes_accessed = 4 * (B * (sd + ad + d_out) + (sd + ad) * H + H + H * d_out + d_out)

    y_t = pl.pallas_call(
        _mlp_kernel_lanes,
        out_shape=jax.ShapeDtypeStruct((d_out, B), state.dtype),
        grid_spec=pltpu.PrefetchScalarGridSpec(
            num_scalar_prefetch=0,
            grid=grid,
            in_specs=[
                pl.BlockSpec((sd, tb), lambda i: (0, i)),
                pl.BlockSpec((ad, tb), lambda i: (0, i)),
                pl.BlockSpec((H, sd), lambda i: (0, 0)),
                pl.BlockSpec((H, ad), lambda i: (0, 0)),
                pl.BlockSpec((H, 1), lambda i: (0, 0)),
                pl.BlockSpec((d_out, H), lambda i: (0, 0)),
                pl.BlockSpec((d_out, 1), lambda i: (0, 0)),
            ],
            out_specs=pl.BlockSpec((d_out, tb), lambda i: (0, i)),
        ),
        # "parallel" shards batch tiles across TensorCores on v7x; no-op on v5e/v6e.
        compiler_params=pltpu.CompilerParams(dimension_semantics=("parallel",)),
        cost_estimate=pl.CostEstimate(
            flops=flops, transcendentals=0, bytes_accessed=bytes_accessed),
    )(st, at, p["w1s_t"], p["w1a_t"], p["b1_col"], p["w2_t"], p["b2_col"])
    return jnp.transpose(y_t)    # back to [B, d_out]


def feedforward_nn(state, action, params):
    """state: [B, state_dim], action: [B, action_dim] -> [B, state_dim]."""
    if state.shape[0] <= _LANE_PATH_MIN_BATCH:
        return _forward_batch_major(state, action, params)
    return _forward_lane_major(state, action, params)


if __name__ == "__main__":
    # Small shapes consistent with the module's forward.
    batch = 8
    state_dim = 8
    action_dim = 4
    hidden_size = 64

    key = jax.random.PRNGKey(0)
    k_s, k_a, k_w1, k_b1, k_w2, k_b2 = jax.random.split(key, 6)

    state = jax.random.normal(k_s, (batch, state_dim), dtype=jnp.float32)
    action = jax.random.normal(k_a, (batch, action_dim), dtype=jnp.float32)

    d_in = state_dim + action_dim
    # Deterministic init mimicking nn.Linear's U(-1/sqrt(fan_in), 1/sqrt(fan_in)).
    lim1 = 1.0 / jnp.sqrt(jnp.float32(d_in))
    lim2 = 1.0 / jnp.sqrt(jnp.float32(hidden_size))
    w1 = jax.random.uniform(k_w1, (d_in, hidden_size), jnp.float32, -lim1, lim1)
    b1 = jax.random.uniform(k_b1, (hidden_size,), jnp.float32, -lim1, lim1)
    w2 = jax.random.uniform(k_w2, (hidden_size, state_dim), jnp.float32, -lim2, lim2)
    b2 = jax.random.uniform(k_b2, (state_dim,), jnp.float32, -lim2, lim2)

    params = prepare_params(w1, b1, w2, b2, state_dim)  # one-time weight prep
    fwd = jax.jit(feedforward_nn)

    def ref(s, a):
        x = jnp.concatenate([s, a], axis=1)
        h = jnp.maximum(jnp.dot(x, w1, precision=_PREC) + b1, 0.0)
        return jnp.dot(h, w2, precision=_PREC) + b2

    # Path 1: small batch (batch-major, single block).
    out = fwd(state, action, params)
    jax.block_until_ready(out)
    assert out.shape == (batch, state_dim)
    assert jnp.allclose(out, ref(state, action), atol=1e-5, rtol=1e-5)

    # Path 2: large batch (batch-on-lanes, lane-dense, multi-step grid).
    big = 4096
    kb_s, kb_a = jax.random.split(jax.random.PRNGKey(1), 2)
    state_b = jax.random.normal(kb_s, (big, state_dim), dtype=jnp.float32)
    action_b = jax.random.normal(kb_a, (big, action_dim), dtype=jnp.float32)
    out_b = fwd(state_b, action_b, params)
    jax.block_until_ready(out_b)
    assert out_b.shape == (big, state_dim)
    assert jnp.allclose(out_b, ref(state_b, action_b), atol=1e-5, rtol=1e-5)

    print("KERNEL_OK")
</pallas_src>

<mosaic_0001>
module attributes {stable_mosaic.version = 11 : i64} {
  func.func @_mlp_kernel_bm(%arg0: i32, %arg1: memref<8x8xf32, #tpu.memory_space<vmem>>, %arg2: memref<8x4xf32, #tpu.memory_space<vmem>>, %arg3: memref<8x64xf32, #tpu.memory_space<vmem>>, %arg4: memref<4x64xf32, #tpu.memory_space<vmem>>, %arg5: memref<1x64xf32, #tpu.memory_space<vmem>>, %arg6: memref<64x8xf32, #tpu.memory_space<vmem>>, %arg7: memref<1x8xf32, #tpu.memory_space<vmem>>, %arg8: memref<8x8xf32, #tpu.memory_space<vmem>>) attributes {dimension_semantics = [#tpu.dimension_semantics<arbitrary>], iteration_bounds = array<i64: 1>, scalar_prefetch = 0 : i64, scratch_operands = 0 : i64, tpu.core_type = #tpu.core_type<tc>, window_params = [{pipeline_mode = #tpu.pipeline_mode<synchronous>, transform_indices = @transform_0, window_bounds = array<i64: 8, 8>}, {pipeline_mode = #tpu.pipeline_mode<synchronous>, transform_indices = @transform_1, window_bounds = array<i64: 8, 4>}, {pipeline_mode = #tpu.pipeline_mode<synchronous>, transform_indices = @transform_2, window_bounds = array<i64: 8, 64>}, {pipeline_mode = #tpu.pipeline_mode<synchronous>, transform_indices = @transform_3, window_bounds = array<i64: 4, 64>}, {pipeline_mode = #tpu.pipeline_mode<synchronous>, transform_indices = @transform_4, window_bounds = array<i64: 1, 64>}, {pipeline_mode = #tpu.pipeline_mode<synchronous>, transform_indices = @transform_5, window_bounds = array<i64: 64, 8>}, {pipeline_mode = #tpu.pipeline_mode<synchronous>, transform_indices = @transform_6, window_bounds = array<i64: 1, 8>}, {pipeline_mode = #tpu.pipeline_mode<synchronous>, transform_indices = @transform_7, window_bounds = array<i64: 8, 8>}]} {
    %c0 = arith.constant 0 : index
    %c0_0 = arith.constant 0 : index
    %0 = vector.load %arg1[%c0, %c0_0] : memref<8x8xf32, #tpu.memory_space<vmem>>, vector<8x8xf32>
    %c0_1 = arith.constant 0 : index
    %c0_2 = arith.constant 0 : index
    %1 = vector.load %arg3[%c0_1, %c0_2] : memref<8x64xf32, #tpu.memory_space<vmem>>, vector<8x64xf32>
    %cst = arith.constant dense<0.000000e+00> : vector<8x64xf32>
    %2 = tpu.matmul %0, %1, %cst {dimension_numbers = #tpu.dot_dimension_numbers<[1], [0], [0], [1], [0, 0, 1, 1], [], []>, precision = #tpu.contract_precision<fp32>} : vector<8x8xf32>, vector<8x64xf32>, vector<8x64xf32> -> vector<8x64xf32>
    %c0_3 = arith.constant 0 : index
    %c0_4 = arith.constant 0 : index
    %3 = vector.load %arg2[%c0_3, %c0_4] : memref<8x4xf32, #tpu.memory_space<vmem>>, vector<8x4xf32>
    %c0_5 = arith.constant 0 : index
    %c0_6 = arith.constant 0 : index
    %4 = vector.load %arg4[%c0_5, %c0_6] : memref<4x64xf32, #tpu.memory_space<vmem>>, vector<4x64xf32>
    %cst_7 = arith.constant dense<0.000000e+00> : vector<8x64xf32>
    %5 = tpu.matmul %3, %4, %cst_7 {dimension_numbers = #tpu.dot_dimension_numbers<[1], [0], [0], [1], [0, 0, 1, 1], [], []>, precision = #tpu.contract_precision<fp32>} : vector<8x4xf32>, vector<4x64xf32>, vector<8x64xf32> -> vector<8x64xf32>
    %6 = arith.addf %2, %5 : vector<8x64xf32>
    %c0_8 = arith.constant 0 : index
    %c0_9 = arith.constant 0 : index
    %7 = vector.load %arg5[%c0_8, %c0_9] : memref<1x64xf32, #tpu.memory_space<vmem>>, vector<1x64xf32>
    %8 = vector.broadcast %7 : vector<1x64xf32> to vector<8x64xf32>
    %9 = arith.addf %6, %8 : vector<8x64xf32>
    %cst_10 = arith.constant 0.000000e+00 : f32
    %10 = vector.broadcast %cst_10 : f32 to vector<8x64xf32>
    %11 = arith.maximumf %9, %10 : vector<8x64xf32>
    %c0_11 = arith.constant 0 : index
    %c0_12 = arith.constant 0 : index
    %12 = vector.load %arg6[%c0_11, %c0_12] : memref<64x8xf32, #tpu.memory_space<vmem>>, vector<64x8xf32>
    %cst_13 = arith.constant dense<0.000000e+00> : vector<8x8xf32>
    %13 = tpu.matmul %11, %12, %cst_13 {dimension_numbers = #tpu.dot_dimension_numbers<[1], [0], [0], [1], [0, 0, 1, 1], [], []>, precision = #tpu.contract_precision<fp32>} : vector<8x64xf32>, vector<64x8xf32>, vector<8x8xf32> -> vector<8x8xf32>
    %c0_14 = arith.constant 0 : index
    %c0_15 = arith.constant 0 : index
    %14 = vector.load %arg7[%c0_14, %c0_15] : memref<1x8xf32, #tpu.memory_space<vmem>>, vector<1x8xf32>
    %15 = vector.broadcast %14 : vector<1x8xf32> to vector<8x8xf32>
    %16 = arith.addf %13, %15 : vector<8x8xf32>
    %c0_16 = arith.constant 0 : index
    %c0_17 = arith.constant 0 : index
    %17 = vector.load %arg8[%c0_16, %c0_17] : memref<8x8xf32, #tpu.memory_space<vmem>>, vector<8x8xf32>
    tpu.vector_store %arg8[%c0_16, %c0_17], %16 {strides = array<i32>} : memref<8x8xf32, #tpu.memory_space<vmem>>, vector<8x8xf32>,
    return
  }
  func.func @transform_0(%arg0: i32) -> (i32, i32) {
    %c0_i32 = arith.constant 0 : i32
    %c0_i32_0 = arith.constant 0 : i32
    %c0_i32_1 = arith.constant 0 : i32
    return %c0_i32, %c0_i32_0 : i32, i32
  }
  func.func @transform_1(%arg0: i32) -> (i32, i32) {
    %c0_i32 = arith.constant 0 : i32
    %c0_i32_0 = arith.constant 0 : i32
    %c0_i32_1 = arith.constant 0 : i32
    return %c0_i32, %c0_i32_0 : i32, i32
  }
  func.func @transform_2(%arg0: i32) -> (i32, i32) {
    %c0_i32 = arith.constant 0 : i32
    %c0_i32_0 = arith.constant 0 : i32
    %c0_i32_1 = arith.constant 0 : i32
    return %c0_i32, %c0_i32_0 : i32, i32
  }
  func.func @transform_3(%arg0: i32) -> (i32, i32) {
    %c0_i32 = arith.constant 0 : i32
    %c0_i32_0 = arith.constant 0 : i32
    %c0_i32_1 = arith.constant 0 : i32
    return %c0_i32, %c0_i32_0 : i32, i32
  }
  func.func @transform_4(%arg0: i32) -> (i32, i32) {
    %c0_i32 = arith.constant 0 : i32
    %c0_i32_0 = arith.constant 0 : i32
    %c0_i32_1 = arith.constant 0 : i32
    return %c0_i32, %c0_i32_0 : i32, i32
  }
  func.func @transform_5(%arg0: i32) -> (i32, i32) {
    %c0_i32 = arith.constant 0 : i32
    %c0_i32_0 = arith.constant 0 : i32
    %c0_i32_1 = arith.constant 0 : i32
    return %c0_i32, %c0_i32_0 : i32, i32
  }
  func.func @transform_6(%arg0: i32) -> (i32, i32) {
    %c0_i32 = arith.constant 0 : i32
    %c0_i32_0 = arith.constant 0 : i32
    %c0_i32_1 = arith.constant 0 : i32
    return %c0_i32, %c0_i32_0 : i32, i32
  }
  func.func @transform_7(%arg0: i32) -> (i32, i32) {
    %c0_i32 = arith.constant 0 : i32
    %c0_i32_0 = arith.constant 0 : i32
    %c0_i32_1 = arith.constant 0 : i32
    return %c0_i32, %c0_i32_0 : i32, i32
  }
}

</mosaic_0001>

<llo_original>
// kernel: feedforward_nn.1
$region0: #{feedforward_nn.1}
  #allocation0 [shape = 'u32[]', space=smem, size = 0x4, offset = 0x4, fixed_abs, tag = 'smem constant byte address 0x4 - core index']
  #allocation1 [shape = 'u32[144,128]{1,0:T(1,128)}', space=vmem, size = 0x12000, scoped, tag = 'internal scratch']
  %s0 = inlined_call_operand.vmem [shape: f32[8,8], index: 0, kind: input, shape index: {}]
  %s1 = inlined_call_operand.vmem [shape: f32[8,4], index: 1, kind: input, shape index: {}]
  %s2 = inlined_call_operand.vmem [shape: f32[8,64], index: 2, kind: input, shape index: {}]
  %s3 = inlined_call_operand.vmem [shape: f32[4,64], index: 3, kind: input, shape index: {}]
  %s4 = inlined_call_operand.vmem [shape: f32[1,64], index: 4, kind: input, shape index: {}]
  %s5 = inlined_call_operand.vmem [shape: f32[64,8], index: 5, kind: input, shape index: {}]
  %s6 = inlined_call_operand.vmem [shape: f32[1,8], index: 6, kind: input, shape index: {}]
  %s7 = inlined_call_operand.hbm [shape: f32[8,8], index: 7, kind: output, shape index: {}]
  %s8 = sld [smem:[#allocation0]]
  $region38: #{feedforward_nn.1} parent=0
    _
  %s10 = ssub.s32 1, %s8
  %s11 = scalar_select 0, %s10, %s8
  $region1: #{feedforward_nn.1} parent=0
    #allocation2 [shape = 'u8[4096]{0}', space=vmem, size = 0x1000, scoped, tag = 'output window, operand 0, single buffered']
    #allocation3 [shape = 's32[1]{0}', space=sflag, size = 0x4, scoped, tag = 'scoped memory for feedforward_nn.1']
    %12 = vsyncpa [#allocation3], 0
    // Predicated region
    $region2: #{feedforward_nn.1} parent=1 // pred_check
      _
    $region3: #{feedforward_nn.1} parent=1 // pred_check_branch
      %14 = sbr.rel (0) target = $region5
    $region4: #{feedforward_nn.1} parent=1 // pred_region
      _
    $region5: #{feedforward_nn.1} parent=1 // pred_fallthru
      _
    // Predicated region
    $region6: #{feedforward_nn.1} parent=1 // pred_check
      _
    $region7: #{feedforward_nn.1} parent=1 // pred_check_branch
      %16 = sbr.rel (0) target = $region9
    $region8: #{feedforward_nn.1} parent=1 // pred_region
      _
    $region9: #{feedforward_nn.1} parent=1 // pred_fallthru
      _
    // Predicated region
    $region10: #{feedforward_nn.1} parent=1 // pred_check
      _
    $region11: #{feedforward_nn.1} parent=1 // pred_check_branch
      %18 = sbr.rel (0) target = $region13
    $region12: #{feedforward_nn.1} parent=1 // pred_region
      _
    $region13: #{feedforward_nn.1} parent=1 // pred_fallthru
      _
    // Predicated region
    $region14: #{feedforward_nn.1} parent=1 // pred_check
      _
    $region15: #{feedforward_nn.1} parent=1 // pred_check_branch
      %20 = sbr.rel (0) target = $region17
    $region16: #{feedforward_nn.1} parent=1 // pred_region
      _
    $region17: #{feedforward_nn.1} parent=1 // pred_fallthru
      _
    // Predicated region
    $region18: #{feedforward_nn.1} parent=1 // pred_check
      _
    $region19: #{feedforward_nn.1} parent=1 // pred_check_branch
      %22 = sbr.rel (0) target = $region21
    $region20: #{feedforward_nn.1} parent=1 // pred_region
      _
    $region21: #{feedforward_nn.1} parent=1 // pred_fallthru
      _
    // Predicated region
    $region22: #{feedforward_nn.1} parent=1 // pred_check
      _
    $region23: #{feedforward_nn.1} parent=1 // pred_check_branch
      %24 = sbr.rel (0) target = $region25
    $region24: #{feedforward_nn.1} parent=1 // pred_region
      _
    $region25: #{feedforward_nn.1} parent=1 // pred_fallthru
      _
    // Predicated region
    $region26: #{feedforward_nn.1} parent=1 // pred_check
      _
    $region27: #{feedforward_nn.1} parent=1 // pred_check_branch
      %26 = sbr.rel (0) target = $region29
    $region28: #{feedforward_nn.1} parent=1 // pred_region
      _
    $region29: #{feedforward_nn.1} parent=1 // pred_fallthru
      _
    %v27 = vld [vmem:[%s0] sm:$0xff]
    %v28 = vld [vmem:[%s2] sm:$0xff]
    %v29 = vld [vmem:[%s1] sm:$0xff]
    %v30 = vld [vmem:[%s3] sm:$0xf]
    %vm31 = vcmask 31744
    %v33 = vsel %vm31, %v29, 0
    %vm35 = vcmask 1043456
    %v37 = vsel %vm35, %v30, 0
    %39 = vmatprep.subr.mxu0 0.0
    %v40 = vand.u32 %v37, 4294901760
    %41 = vmatpush1.msra.mxu0 %v40
    %42 = vmatprep.subr.mxu0 0.0
    %43 = vmatpush1.msra.mxu0 0.0
    %44 = vmatprep.subr.mxu0 0.0
    %45 = vmatpush1.msra.mxu0 0.0
    %46 = vmatprep.subr.mxu0 0.0
    %47 = vmatpush1.msra.mxu0 0.0
    %48 = vmatprep.subr.mxu0 0.0
    %49 = vmatpush1.msra.mxu0 0.0
    %50 = vmatprep.subr.mxu0 0.0
    %51 = vmatpush1.msra.mxu0 0.0
    %52 = vmatprep.subr.mxu0 0.0
    %53 = vmatpush1.msra.mxu0 0.0
    %54 = vmatprep.subr.mxu0 0.0
    %55 = vmatpush1.msra.mxu0 0.0
    %56 = vmatprep.subr.mxu0 0.0
    %57 = vmatpush1.msra.mxu0 0.0
    %58 = vmatprep.subr.mxu0 0.0
    %59 = vmatpush1.msra.mxu0 0.0
    %60 = vmatprep.subr.mxu0 0.0
    %61 = vmatpush1.msra.mxu0 0.0
    %62 = vmatprep.subr.mxu0 0.0
    %63 = vmatpush1.msra.mxu0 0.0
    %64 = vmatprep.subr.mxu0 0.0
    %65 = vmatpush1.msra.mxu0 0.0
    %66 = vmatprep.subr.mxu0 0.0
    %67 = vmatpush1.msra.mxu0 0.0
    %68 = vmatprep.subr.mxu0 0.0
    %69 = vmatpush1.msra.mxu0 0.0
    %70 = vmatprep.subr.mxu0 0.0
    %71 = vmatpush1.msra.mxu0 0.0
    %72 = vmatprep.subr.mxu0 0.0
    %73 = vmatpush1.msra.mxu0 0.0
    %74 = vmatprep.subr.mxu0 0.0
    %75 = vmatpush1.msra.mxu0 0.0
    %76 = vmatprep.subr.mxu0 0.0
    %77 = vmatpush1.msra.mxu0 0.0
    %78 = vmatprep.subr.mxu0 0.0
    %79 = vmatpush1.msra.mxu0 0.0
    %80 = vmatprep.subr.mxu0 0.0
    %81 = vmatpush1.msra.mxu0 0.0
    %82 = vmatprep.subr.mxu0 0.0
    %83 = vmatpush1.msra.mxu0 0.0
    %84 = vmatprep.subr.mxu0 0.0
    %85 = vmatpush1.msra.mxu0 0.0
    %86 = vmatprep.subr.mxu0 0.0
    %87 = vmatpush1.msra.mxu0 0.0
    %88 = vmatprep.subr.mxu0 0.0
    %89 = vmatpush1.msra.mxu0 0.0
    %90 = vmatprep.subr.mxu0 0.0
    %91 = vmatpush1.msra.mxu0 0.0
    %92 = vmatprep.subr.mxu0 0.0
    %93 = vmatpush1.msra.mxu0 0.0
    %94 = vmatprep.subr.mxu0 0.0
    %95 = vmatpush1.msra.mxu0 0.0
    %96 = vmatprep.subr.mxu0 0.0
    %97 = vmatpush1.msra.mxu0 0.0
    %98 = vmatprep.subr.mxu0 0.0
    %99 = vmatpush1.msra.mxu0 0.0
    %100 = vmatprep.subr.mxu0 0.0
    %101 = vmatpush1.msra.mxu0 0.0
    %102 = vmatprep.subr.mxu0 0.0
    %103 = vmatpush1.msra.mxu0 0.0
    %104 = vmatprep.mubr.f32.mxu0 0.0
    %v105 = vand.u32 %v33, 4294901760
    %v106 = vsub.f32 %v33, %v105
    %v107 = vand.u32 %v106, 4294901760
    %v108 = vsub.f32 %v106, %v107
    %v109 = vand.u32 %v108, 4294901760
    %110 = vmatmul.mubr.f32.gmra.mrb[0].mxu0 %v109
    %v111 = vpop.f32.mrb[0].mxu0
    %v112 = vadd.f32 0.0, %v111
    %v113 = vpop.f32.mrb[0].mxu0
    %114 = vdwg.mxu0
    %115 = vmatprep.subr.mxu0 0.0
    %v116 = vand.u32 %v37, 4294901760
    %v117 = vsub.f32 %v37, %v116
    %v118 = vand.u32 %v117, 4294901760
    %v119 = vsub.f32 %v117, %v118
    %v120 = vand.u32 %v119, 4294901760
    %121 = vmatpush1.msra.mxu0 %v120
    %122 = vmatprep.subr.mxu0 0.0
    %123 = vmatpush1.msra.mxu0 0.0
    %124 = vmatprep.subr.mxu0 0.0
    %125 = vmatpush1.msra.mxu0 0.0
    %126 = vmatprep.subr.mxu0 0.0
    %127 = vmatpush1.msra.mxu0 0.0
    %128 = vmatprep.subr.mxu0 0.0
    %129 = vmatpush1.msra.mxu0 0.0
    %130 = vmatprep.subr.mxu0 0.0
    %131 = vmatpush1.msra.mxu0 0.0
    %132 = vmatprep.subr.mxu0 0.0
    %133 = vmatpush1.msra.mxu0 0.0
    %134 = vmatprep.subr.mxu0 0.0
    %135 = vmatpush1.msra.mxu0 0.0
    %136 = vmatprep.subr.mxu0 0.0
    %137 = vmatpush1.msra.mxu0 0.0
    %138 = vmatprep.subr.mxu0 0.0
    %139 = vmatpush1.msra.mxu0 0.0
    %140 = vmatprep.subr.mxu0 0.0
    %141 = vmatpush1.msra.mxu0 0.0
    %142 = vmatprep.subr.mxu0 0.0
    %143 = vmatpush1.msra.mxu0 0.0
    %144 = vmatprep.subr.mxu0 0.0
    %145 = vmatpush1.msra.mxu0 0.0
    %146 = vmatprep.subr.mxu0 0.0
    %147 = vmatpush1.msra.mxu0 0.0
    %148 = vmatprep.subr.mxu0 0.0
    %149 = vmatpush1.msra.mxu0 0.0
    %150 = vmatprep.subr.mxu0 0.0
    %151 = vmatpush1.msra.mxu0 0.0
    %152 = vmatprep.subr.mxu0 0.0
    %153 = vmatpush1.msra.mxu0 0.0
    %154 = vmatprep.subr.mxu0 0.0
    %155 = vmatpush1.msra.mxu0 0.0
    %156 = vmatprep.subr.mxu0 0.0
    %157 = vmatpush1.msra.mxu0 0.0
    %158 = vmatprep.subr.mxu0 0.0
    %159 = vmatpush1.msra.mxu0 0.0
    %160 = vmatprep.subr.mxu0 0.0
    %161 = vmatpush1.msra.mxu0 0.0
    %162 = vmatprep.subr.mxu0 0.0
    %163 = vmatpush1.msra.mxu0 0.0
    %164 = vmatprep.subr.mxu0 0.0
    %165 = vmatpush1.msra.mxu0 0.0
    %166 = vmatprep.subr.mxu0 0.0
    %167 = vmatpush1.msra.mxu0 0.0
    %168 = vmatprep.subr.mxu0 0.0
    %169 = vmatpush1.msra.mxu0 0.0
    %170 = vmatprep.subr.mxu0 0.0
    %171 = vmatpush1.msra.mxu0 0.0
    %172 = vmatprep.subr.mxu0 0.0
    %173 = vmatpush1.msra.mxu0 0.0
    %174 = vmatprep.subr.mxu0 0.0
    %175 = vmatpush1.msra.mxu0 0.0
    %176 = vmatprep.subr.mxu0 0.0
    %177 = vmatpush1.msra.mxu0 0.0
    %178 = vmatprep.subr.mxu0 0.0
    %179 = vmatpush1.msra.mxu0 0.0
    %180 = vmatprep.subr.mxu0 0.0
    %181 = vmatpush1.msra.mxu0 0.0
    %182 = vmatprep.subr.mxu0 0.0
    %183 = vmatpush1.msra.mxu0 0.0
    %184 = vmatprep.mubr.f32.mxu0 0.0
    %v185 = vand.u32 %v33, 4294901760
    %186 = vmatmul.mubr.f32.gmra.mrb[0].mxu0 %v185
    %v187 = vpop.f32.mrb[0].mxu0
    %v188 = vadd.f32 %v112, %v187
    %v189 = vpop.f32.mrb[0].mxu0
    %190 = vdwg.mxu0
    %191 = vmatprep.subr.mxu0 0.0
    %v192 = vand.u32 %v37, 4294901760
    %v193 = vsub.f32 %v37, %v192
    %194 = vmatpush1.msra.mxu0 %v193
    %195 = vmatprep.subr.mxu0 0.0
    %196 = vmatpush1.msra.mxu0 0.0
    %197 = vmatprep.subr.mxu0 0.0
    %198 = vmatpush1.msra.mxu0 0.0
    %199 = vmatprep.subr.mxu0 0.0
    %200 = vmatpush1.msra.mxu0 0.0
    %201 = vmatprep.subr.mxu0 0.0
    %202 = vmatpush1.msra.mxu0 0.0
    %203 = vmatprep.subr.mxu0 0.0
    %204 = vmatpush1.msra.mxu0 0.0
    %205 = vmatprep.subr.mxu0 0.0
    %206 = vmatpush1.msra.mxu0 0.0
    %207 = vmatprep.subr.mxu0 0.0
    %208 = vmatpush1.msra.mxu0 0.0
    %209 = vmatprep.subr.mxu0 0.0
    %210 = vmatpush1.msra.mxu0 0.0
    %211 = vmatprep.subr.mxu0 0.0
    %212 = vmatpush1.msra.mxu0 0.0
    %213 = vmatprep.subr.mxu0 0.0
    %214 = vmatpush1.msra.mxu0 0.0
    %215 = vmatprep.subr.mxu0 0.0
    %216 = vmatpush1.msra.mxu0 0.0
    %217 = vmatprep.subr.mxu0 0.0
    %218 = vmatpush1.msra.mxu0 0.0
    %219 = vmatprep.subr.mxu0 0.0
    %220 = vmatpush1.msra.mxu0 0.0
    %221 = vmatprep.subr.mxu0 0.0
    %222 = vmatpush1.msra.mxu0 0.0
    %223 = vmatprep.subr.mxu0 0.0
    %224 = vmatpush1.msra.mxu0 0.0
    %225 = vmatprep.subr.mxu0 0.0
    %226 = vmatpush1.msra.mxu0 0.0
    %227 = vmatprep.subr.mxu0 0.0
    %228 = vmatpush1.msra.mxu0 0.0
    %229 = vmatprep.subr.mxu0 0.0
    %230 = vmatpush1.msra.mxu0 0.0
    %231 = vmatprep.subr.mxu0 0.0
    %232 = vmatpush1.msra.mxu0 0.0
    %233 = vmatprep.subr.mxu0 0.0
    %234 = vmatpush1.msra.mxu0 0.0
    %235 = vmatprep.subr.mxu0 0.0
    %236 = vmatpush1.msra.mxu0 0.0
    %237 = vmatprep.subr.mxu0 0.0
    %238 = vmatpush1.msra.mxu0 0.0
    %239 = vmatprep.subr.mxu0 0.0
    %240 = vmatpush1.msra.mxu0 0.0
    %241 = vmatprep.subr.mxu0 0.0
    %242 = vmatpush1.msra.mxu0 0.0
    %243 = vmatprep.subr.mxu0 0.0
    %244 = vmatpush1.msra.mxu0 0.0
    %245 = vmatprep.subr.mxu0 0.0
    %246 = vmatpush1.msra.mxu0 0.0
    %247 = vmatprep.subr.mxu0 0.0
    %248 = vmatpush1.msra.mxu0 0.0
    %249 = vmatprep.subr.mxu0 0.0
    %250 = vmatpush1.msra.mxu0 0.0
    %251 = vmatprep.subr.mxu0 0.0
    %252 = vmatpush1.msra.mxu0 0.0
    %253 = vmatprep.subr.mxu0 0.0
    %254 = vmatpush1.msra.mxu0 0.0
    %255 = vmatprep.subr.mxu0 0.0
    %256 = vmatpush1.msra.mxu0 0.0
    %257 = vmatprep.mubr.f32.mxu0 0.0
    %v258 = vand.u32 %v33, 4294901760
    %v259 = vsub.f32 %v33, %v258
    %260 = vmatmul.mubr.f32.gmra.mrb[0].mxu0 %v259
    %v261 = vpop.f32.mrb[0].mxu0
    %v262 = vadd.f32 %v188, %v261
    %v263 = vpop.f32.mrb[0].mxu0
    %264 = vdwg.mxu0
    %265 = vmatprep.subr.mxu0 0.0
    %v266 = vand.u32 %v37, 4294901760
    %267 = vmatpush1.msra.mxu0 %v266
    %268 = vmatprep.subr.mxu0 0.0
    %269 = vmatpush1.msra.mxu0 0.0
    %270 = vmatprep.subr.mxu0 0.0
    %271 = vmatpush1.msra.mxu0 0.0
    %272 = vmatprep.subr.mxu0 0.0
    %273 = vmatpush1.msra.mxu0 0.0
    %274 = vmatprep.subr.mxu0 0.0
    %275 = vmatpush1.msra.mxu0 0.0
    %276 = vmatprep.subr.mxu0 0.0
    %277 = vmatpush1.msra.mxu0 0.0
    %278 = vmatprep.subr.mxu0 0.0
    %279 = vmatpush1.msra.mxu0 0.0
    %280 = vmatprep.subr.mxu0 0.0
    %281 = vmatpush1.msra.mxu0 0.0
    %282 = vmatprep.subr.mxu0 0.0
    %283 = vmatpush1.msra.mxu0 0.0
    %284 = vmatprep.subr.mxu0 0.0
    %285 = vmatpush1.msra.mxu0 0.0
    %286 = vmatprep.subr.mxu0 0.0
    %287 = vmatpush1.msra.mxu0 0.0
    %288 = vmatprep.subr.mxu0 0.0
    %289 = vmatpush1.msra.mxu0 0.0
    %290 = vmatprep.subr.mxu0 0.0
    %291 = vmatpush1.msra.mxu0 0.0
    %292 = vmatprep.subr.mxu0 0.0
    %293 = vmatpush1.msra.mxu0 0.0
    %294 = vmatprep.subr.mxu0 0.0
    %295 = vmatpush1.msra.mxu0 0.0
    %296 = vmatprep.subr.mxu0 0.0
    %297 = vmatpush1.msra.mxu0 0.0
    %298 = vmatprep.subr.mxu0 0.0
    %299 = vmatpush1.msra.mxu0 0.0
    %300 = vmatprep.subr.mxu0 0.0
    %301 = vmatpush1.msra.mxu0 0.0
    %302 = vmatprep.subr.mxu0 0.0
    %303 = vmatpush1.msra.mxu0 0.0
    %304 = vmatprep.subr.mxu0 0.0
    %305 = vmatpush1.msra.mxu0 0.0
    %306 = vmatprep.subr.mxu0 0.0
    %307 = vmatpush1.msra.mxu0 0.0
    %308 = vmatprep.subr.mxu0 0.0
    %309 = vmatpush1.msra.mxu0 0.0
    %310 = vmatprep.subr.mxu0 0.0
    %311 = vmatpush1.msra.mxu0 0.0
    %312 = vmatprep.subr.mxu0 0.0
    %313 = vmatpush1.msra.mxu0 0.0
    %314 = vmatprep.subr.mxu0 0.0
    %315 = vmatpush1.msra.mxu0 0.0
    %316 = vmatprep.subr.mxu0 0.0
    %317 = vmatpush1.msra.mxu0 0.0
    %318 = vmatprep.subr.mxu0 0.0
    %319 = vmatpush1.msra.mxu0 0.0
    %320 = vmatprep.subr.mxu0 0.0
    %321 = vmatpush1.msra.mxu0 0.0
    %322 = vmatprep.subr.mxu0 0.0
    %323 = vmatpush1.msra.mxu0 0.0
    %324 = vmatprep.subr.mxu0 0.0
    %325 = vmatpush1.msra.mxu0 0.0
    %326 = vmatprep.subr.mxu0 0.0
    %327 = vmatpush1.msra.mxu0 0.0
    %328 = vmatprep.subr.mxu0 0.0
    %329 = vmatpush1.msra.mxu0 0.0
    %330 = vmatprep.mubr.f32.mxu0 0.0
    %v331 = vand.u32 %v33, 4294901760
    %v332 = vsub.f32 %v33, %v331
    %v333 = vand.u32 %v332, 4294901760
    %334 = vmatmul.mubr.f32.gmra.mrb[0].mxu0 %v333
    %v335 = vpop.f32.mrb[0].mxu0
    %v336 = vadd.f32 %v262, %v335
    %v337 = vpop.f32.mrb[0].mxu0
    %338 = vdwg.mxu0
    %339 = vmatprep.subr.mxu0 0.0
    %v340 = vand.u32 %v37, 4294901760
    %v341 = vsub.f32 %v37, %v340
    %v342 = vand.u32 %v341, 4294901760
    %343 = vmatpush1.msra.mxu0 %v342
    %344 = vmatprep.subr.mxu0 0.0
    %345 = vmatpush1.msra.mxu0 0.0
    %346 = vmatprep.subr.mxu0 0.0
    %347 = vmatpush1.msra.mxu0 0.0
    %348 = vmatprep.subr.mxu0 0.0
    %349 = vmatpush1.msra.mxu0 0.0
    %350 = vmatprep.subr.mxu0 0.0
    %351 = vmatpush1.msra.mxu0 0.0
    %352 = vmatprep.subr.mxu0 0.0
    %353 = vmatpush1.msra.mxu0 0.0
    %354 = vmatprep.subr.mxu0 0.0
    %355 = vmatpush1.msra.mxu0 0.0
    %356 = vmatprep.subr.mxu0 0.0
    %357 = vmatpush1.msra.mxu0 0.0
    %358 = vmatprep.subr.mxu0 0.0
    %359 = vmatpush1.msra.mxu0 0.0
    %360 = vmatprep.subr.mxu0 0.0
    %361 = vmatpush1.msra.mxu0 0.0
    %362 = vmatprep.subr.mxu0 0.0
    %363 = vmatpush1.msra.mxu0 0.0
    %364 = vmatprep.subr.mxu0 0.0
    %365 = vmatpush1.msra.mxu0 0.0
    %366 = vmatprep.subr.mxu0 0.0
    %367 = vmatpush1.msra.mxu0 0.0
    %368 = vmatprep.subr.mxu0 0.0
    %369 = vmatpush1.msra.mxu0 0.0
    %370 = vmatprep.subr.mxu0 0.0
    %371 = vmatpush1.msra.mxu0 0.0
    %372 = vmatprep.subr.mxu0 0.0
    %373 = vmatpush1.msra.mxu0 0.0
    %374 = vmatprep.subr.mxu0 0.0
    %375 = vmatpush1.msra.mxu0 0.0
    %376 = vmatprep.subr.mxu0 0.0
    %377 = vmatpush1.msra.mxu0 0.0
    %378 = vmatprep.subr.mxu0 0.0
    %379 = vmatpush1.msra.mxu0 0.0
    %380 = vmatprep.subr.mxu0 0.0
    %381 = vmatpush1.msra.mxu0 0.0
    %382 = vmatprep.subr.mxu0 0.0
    %383 = vmatpush1.msra.mxu0 0.0
    %384 = vmatprep.subr.mxu0 0.0
    %385 = vmatpush1.msra.mxu0 0.0
    %386 = vmatprep.subr.mxu0 0.0
    %387 = vmatpush1.msra.mxu0 0.0
    %388 = vmatprep.subr.mxu0 0.0
    %389 = vmatpush1.msra.mxu0 0.0
    %390 = vmatprep.subr.mxu0 0.0
    %391 = vmatpush1.msra.mxu0 0.0
    %392 = vmatprep.subr.mxu0 0.0
    %393 = vmatpush1.msra.mxu0 0.0
    %394 = vmatprep.subr.mxu0 0.0
    %395 = vmatpush1.msra.mxu0 0.0
    %396 = vmatprep.subr.mxu0 0.0
    %397 = vmatpush1.msra.mxu0 0.0
    %398 = vmatprep.subr.mxu0 0.0
    %399 = vmatpush1.msra.mxu0 0.0
    %400 = vmatprep.subr.mxu0 0.0
    %401 = vmatpush1.msra.mxu0 0.0
    %402 = vmatprep.subr.mxu0 0.0
    %403 = vmatpush1.msra.mxu0 0.0
    %404 = vmatprep.subr.mxu0 0.0
    %405 = vmatpush1.msra.mxu0 0.0
    %406 = vmatprep.mubr.f32.mxu0 0.0
    %v407 = vand.u32 %v33, 4294901760
    %408 = vmatmul.mubr.f32.gmra.mrb[0].mxu0 %v407
    %v409 = vpop.f32.mrb[0].mxu0
    %v410 = vadd.f32 %v336, %v409
    %v411 = vpop.f32.mrb[0].mxu0
    %412 = vdwg.mxu0
    %413 = vmatprep.subr.mxu0 0.0
    %v414 = vand.u32 %v37, 4294901760
    %415 = vmatpush1.msra.mxu0 %v414
    %416 = vmatprep.subr.mxu0 0.0
    %417 = vmatpush1.msra.mxu0 0.0
    %418 = vmatprep.subr.mxu0 0.0
    %419 = vmatpush1.msra.mxu0 0.0
    %420 = vmatprep.subr.mxu0 0.0
    %421 = vmatpush1.msra.mxu0 0.0
    %422 = vmatprep.subr.mxu0 0.0
    %423 = vmatpush1.msra.mxu0 0.0
    %424 = vmatprep.subr.mxu0 0.0
    %425 = vmatpush1.msra.mxu0 0.0
    %426 = vmatprep.subr.mxu0 0.0
    %427 = vmatpush1.msra.mxu0 0.0
    %428 = vmatprep.subr.mxu0 0.0
    %429 = vmatpush1.msra.mxu0 0.0
    %430 = vmatprep.subr.mxu0 0.0
    %431 = vmatpush1.msra.mxu0 0.0
    %432 = vmatprep.subr.mxu0 0.0
    %433 = vmatpush1.msra.mxu0 0.0
    %434 = vmatprep.subr.mxu0 0.0
    %435 = vmatpush1.msra.mxu0 0.0
    %436 = vmatprep.subr.mxu0 0.0
    %437 = vmatpush1.msra.mxu0 0.0
    %438 = vmatprep.subr.mxu0 0.0
    %439 = vmatpush1.msra.mxu0 0.0
    %440 = vmatprep.subr.mxu0 0.0
    %441 = vmatpush1.msra.mxu0 0.0
    %442 = vmatprep.subr.mxu0 0.0
    %443 = vmatpush1.msra.mxu0 0.0
    %444 = vmatprep.subr.mxu0 0.0
    %445 = vmatpush1.msra.mxu0 0.0
    %446 = vmatprep.subr.mxu0 0.0
    %447 = vmatpush1.msra.mxu0 0.0
    %448 = vmatprep.subr.mxu0 0.0
    %449 = vmatpush1.msra.mxu0 0.0
    %450 = vmatprep.subr.mxu0 0.0
    %451 = vmatpush1.msra.mxu0 0.0
    %452 = vmatprep.subr.mxu0 0.0
    %453 = vmatpush1.msra.mxu0 0.0
    %454 = vmatprep.subr.mxu0 0.0
    %455 = vmatpush1.msra.mxu0 0.0
    %456 = vmatprep.subr.mxu0 0.0
    %457 = vmatpush1.msra.mxu0 0.0
    %458 = vmatprep.subr.mxu0 0.0
    %459 = vmatpush1.msra.mxu0 0.0
    %460 = vmatprep.subr.mxu0 0.0
    %461 = vmatpush1.msra.mxu0 0.0
    %462 = vmatprep.subr.mxu0 0.0
    %463 = vmatpush1.msra.mxu0 0.0
    %464 = vmatprep.subr.mxu0 0.0
    %465 = vmatpush1.msra.mxu0 0.0
    %466 = vmatprep.subr.mxu0 0.0
    %467 = vmatpush1.msra.mxu0 0.0
    %468 = vmatprep.subr.mxu0 0.0
    %469 = vmatpush1.msra.mxu0 0.0
    %470 = vmatprep.subr.mxu0 0.0
    %471 = vmatpush1.msra.mxu0 0.0
    %472 = vmatprep.subr.mxu0 0.0
    %473 = vmatpush1.msra.mxu0 0.0
    %474 = vmatprep.subr.mxu0 0.0
    %475 = vmatpush1.msra.mxu0 0.0
    %476 = vmatprep.subr.mxu0 0.0
    %477 = vmatpush1.msra.mxu0 0.0
    %478 = vmatprep.mubr.f32.mxu0 0.0
    %v479 = vand.u32 %v33, 4294901760
    %480 = vmatmul.mubr.f32.gmra.mrb[0].mxu0 %v479
    %v481 = vpop.f32.mrb[0].mxu0
    %v482 = vadd.f32 %v410, %v481
    %v483 = vpop.f32.mrb[0].mxu0
    %484 = vdwg.mxu0
    %vm485 = vcmask 64512
    %v487 = vsel %vm485, %v27, 0
    %489 = vmatprep.subr.mxu0 0.0
    %v490 = vand.u32 %v28, 4294901760
    %491 = vmatpush1.msra.mxu0 %v490
    %492 = vmatprep.subr.mxu0 0.0
    %493 = vmatpush1.msra.mxu0 0.0
    %494 = vmatprep.subr.mxu0 0.0
    %495 = vmatpush1.msra.mxu0 0.0
    %496 = vmatprep.subr.mxu0 0.0
    %497 = vmatpush1.msra.mxu0 0.0
    %498 = vmatprep.subr.mxu0 0.0
    %499 = vmatpush1.msra.mxu0 0.0
    %500 = vmatprep.subr.mxu0 0.0
    %501 = vmatpush1.msra.mxu0 0.0
    %502 = vmatprep.subr.mxu0 0.0
    %503 = vmatpush1.msra.mxu0 0.0
    %504 = vmatprep.subr.mxu0 0.0
    %505 = vmatpush1.msra.mxu0 0.0
    %506 = vmatprep.subr.mxu0 0.0
    %507 = vmatpush1.msra.mxu0 0.0
    %508 = vmatprep.subr.mxu0 0.0
    %509 = vmatpush1.msra.mxu0 0.0
    %510 = vmatprep.subr.mxu0 0.0
    %511 = vmatpush1.msra.mxu0 0.0
    %512 = vmatprep.subr.mxu0 0.0
    %513 = vmatpush1.msra.mxu0 0.0
    %514 = vmatprep.subr.mxu0 0.0
    %515 = vmatpush1.msra.mxu0 0.0
    %516 = vmatprep.subr.mxu0 0.0
    %517 = vmatpush1.msra.mxu0 0.0
    %518 = vmatprep.subr.mxu0 0.0
    %519 = vmatpush1.msra.mxu0 0.0
    %520 = vmatprep.subr.mxu0 0.0
    %521 = vmatpush1.msra.mxu0 0.0
    %522 = vmatprep.subr.mxu0 0.0
    %523 = vmatpush1.msra.mxu0 0.0
    %524 = vmatprep.subr.mxu0 0.0
    %525 = vmatpush1.msra.mxu0 0.0
    %526 = vmatprep.subr.mxu0 0.0
    %527 = vmatpush1.msra.mxu0 0.0
    %528 = vmatprep.subr.mxu0 0.0
    %529 = vmatpush1.msra.mxu0 0.0
    %530 = vmatprep.subr.mxu0 0.0
    %531 = vmatpush1.msra.mxu0 0.0
    %532 = vmatprep.subr.mxu0 0.0
    %533 = vmatpush1.msra.mxu0 0.0
    %534 = vmatprep.subr.mxu0 0.0
    %535 = vmatpush1.msra.mxu0 0.0
    %536 = vmatprep.subr.mxu0 0.0
    %537 = vmatpush1.msra.mxu0 0.0
    %538 = vmatprep.subr.mxu0 0.0
    %539 = vmatpush1.msra.mxu0 0.0
    %540 = vmatprep.subr.mxu0 0.0
    %541 = vmatpush1.msra.mxu0 0.0
    %542 = vmatprep.subr.mxu0 0.0
    %543 = vmatpush1.msra.mxu0 0.0
    %544 = vmatprep.subr.mxu0 0.0
    %545 = vmatpush1.msra.mxu0 0.0
    %546 = vmatprep.subr.mxu0 0.0
    %547 = vmatpush1.msra.mxu0 0.0
    %548 = vmatprep.subr.mxu0 0.0
    %549 = vmatpush1.msra.mxu0 0.0
    %550 = vmatprep.subr.mxu0 0.0
    %551 = vmatpush1.msra.mxu0 0.0
    %552 = vmatprep.subr.mxu0 0.0
    %553 = vmatpush1.msra.mxu0 0.0
    %554 = vmatprep.mubr.f32.mxu0 0.0
    %v555 = vand.u32 %v487, 4294901760
    %v556 = vsub.f32 %v487, %v555
    %v557 = vand.u32 %v556, 4294901760
    %v558 = vsub.f32 %v556, %v557
    %v559 = vand.u32 %v558, 4294901760
    %560 = vmatmul.mubr.f32.gmra.mrb[0].mxu0 %v559
    %v561 = vpop.f32.mrb[0].mxu0
    %v562 = vadd.f32 %v482, %v561
    %v563 = vpop.f32.mrb[0].mxu0
    %564 = vdwg.mxu0
    %565 = vmatprep.subr.mxu0 0.0
    %v566 = vand.u32 %v28, 4294901760
    %v567 = vsub.f32 %v28, %v566
    %v568 = vand.u32 %v567, 4294901760
    %v569 = vsub.f32 %v567, %v568
    %v570 = vand.u32 %v569, 4294901760
    %571 = vmatpush1.msra.mxu0 %v570
    %572 = vmatprep.subr.mxu0 0.0
    %573 = vmatpush1.msra.mxu0 0.0
    %574 = vmatprep.subr.mxu0 0.0
    %575 = vmatpush1.msra.mxu0 0.0
    %576 = vmatprep.subr.mxu0 0.0
    %577 = vmatpush1.msra.mxu0 0.0
    %578 = vmatprep.subr.mxu0 0.0
    %579 = vmatpush1.msra.mxu0 0.0
    %580 = vmatprep.subr.mxu0 0.0
    %581 = vmatpush1.msra.mxu0 0.0
    %582 = vmatprep.subr.mxu0 0.0
    %583 = vmatpush1.msra.mxu0 0.0
    %584 = vmatprep.subr.mxu0 0.0
    %585 = vmatpush1.msra.mxu0 0.0
    %586 = vmatprep.subr.mxu0 0.0
    %587 = vmatpush1.msra.mxu0 0.0
    %588 = vmatprep.subr.mxu0 0.0
    %589 = vmatpush1.msra.mxu0 0.0
    %590 = vmatprep.subr.mxu0 0.0
    %591 = vmatpush1.msra.mxu0 0.0
    %592 = vmatprep.subr.mxu0 0.0
    %593 = vmatpush1.msra.mxu0 0.0
    %594 = vmatprep.subr.mxu0 0.0
    %595 = vmatpush1.msra.mxu0 0.0
    %596 = vmatprep.subr.mxu0 0.0
    %597 = vmatpush1.msra.mxu0 0.0
    %598 = vmatprep.subr.mxu0 0.0
    %599 = vmatpush1.msra.mxu0 0.0
    %600 = vmatprep.subr.mxu0 0.0
    %601 = vmatpush1.msra.mxu0 0.0
    %602 = vmatprep.subr.mxu0 0.0
    %603 = vmatpush1.msra.mxu0 0.0
    %604 = vmatprep.subr.mxu0 0.0
    %605 = vmatpush1.msra.mxu0 0.0
    %606 = vmatprep.subr.mxu0 0.0
    %607 = vmatpush1.msra.mxu0 0.0
    %608 = vmatprep.subr.mxu0 0.0
    %609 = vmatpush1.msra.mxu0 0.0
    %610 = vmatprep.subr.mxu0 0.0
    %611 = vmatpush1.msra.mxu0 0.0
    %612 = vmatprep.subr.mxu0 0.0
    %613 = vmatpush1.msra.mxu0 0.0
    %614 = vmatprep.subr.mxu0 0.0
    %615 = vmatpush1.msra.mxu0 0.0
    %616 = vmatprep.subr.mxu0 0.0
    %617 = vmatpush1.msra.mxu0 0.0
    %618 = vmatprep.subr.mxu0 0.0
    %619 = vmatpush1.msra.mxu0 0.0
    %620 = vmatprep.subr.mxu0 0.0
    %621 = vmatpush1.msra.mxu0 0.0
    %622 = vmatprep.subr.mxu0 0.0
    %623 = vmatpush1.msra.mxu0 0.0
    %624 = vmatprep.subr.mxu0 0.0
    %625 = vmatpush1.msra.mxu0 0.0
    %626 = vmatprep.subr.mxu0 0.0
    %627 = vmatpush1.msra.mxu0 0.0
    %628 = vmatprep.subr.mxu0 0.0
    %629 = vmatpush1.msra.mxu0 0.0
    %630 = vmatprep.subr.mxu0 0.0
    %631 = vmatpush1.msra.mxu0 0.0
    %632 = vmatprep.subr.mxu0 0.0
    %633 = vmatpush1.msra.mxu0 0.0
    %634 = vmatprep.mubr.f32.mxu0 0.0
    %v635 = vand.u32 %v487, 4294901760
    %636 = vmatmul.mubr.f32.gmra.mrb[0].mxu0 %v635
    %v637 = vpop.f32.mrb[0].mxu0
    %v638 = vadd.f32 %v562, %v637
    %v639 = vpop.f32.mrb[0].mxu0
    %640 = vdwg.mxu0
    %641 = vmatprep.subr.mxu0 0.0
    %v642 = vand.u32 %v28, 4294901760
    %v643 = vsub.f32 %v28, %v642
    %644 = vmatpush1.msra.mxu0 %v643
    %645 = vmatprep.subr.mxu0 0.0
    %646 = vmatpush1.msra.mxu0 0.0
    %647 = vmatprep.subr.mxu0 0.0
    %648 = vmatpush1.msra.mxu0 0.0
    %649 = vmatprep.subr.mxu0 0.0
    %650 = vmatpush1.msra.mxu0 0.0
    %651 = vmatprep.subr.mxu0 0.0
    %652 = vmatpush1.msra.mxu0 0.0
    %653 = vmatprep.subr.mxu0 0.0
    %654 = vmatpush1.msra.mxu0 0.0
    %655 = vmatprep.subr.mxu0 0.0
    %656 = vmatpush1.msra.mxu0 0.0
    %657 = vmatprep.subr.mxu0 0.0
    %658 = vmatpush1.msra.mxu0 0.0
    %659 = vmatprep.subr.mxu0 0.0
    %660 = vmatpush1.msra.mxu0 0.0
    %661 = vmatprep.subr.mxu0 0.0
    %662 = vmatpush1.msra.mxu0 0.0
    %663 = vmatprep.subr.mxu0 0.0
    %664 = vmatpush1.msra.mxu0 0.0
    %665 = vmatprep.subr.mxu0 0.0
    %666 = vmatpush1.msra.mxu0 0.0
    %667 = vmatprep.subr.mxu0 0.0
    %668 = vmatpush1.msra.mxu0 0.0
    %669 = vmatprep.subr.mxu0 0.0
    %670 = vmatpush1.msra.mxu0 0.0
    %671 = vmatprep.subr.mxu0 0.0
    %672 = vmatpush1.msra.mxu0 0.0
    %673 = vmatprep.subr.mxu0 0.0
    %674 = vmatpush1.msra.mxu0 0.0
    %675 = vmatprep.subr.mxu0 0.0
    %676 = vmatpush1.msra.mxu0 0.0
    %677 = vmatprep.subr.mxu0 0.0
    %678 = vmatpush1.msra.mxu0 0.0
    %679 = vmatprep.subr.mxu0 0.0
    %680 = vmatpush1.msra.mxu0 0.0
    %681 = vmatprep.subr.mxu0 0.0
    %682 = vmatpush1.msra.mxu0 0.0
    %683 = vmatprep.subr.mxu0 0.0
    %684 = vmatpush1.msra.mxu0 0.0
    %685 = vmatprep.subr.mxu0 0.0
    %686 = vmatpush1.msra.mxu0 0.0
    %687 = vmatprep.subr.mxu0 0.0
    %688 = vmatpush1.msra.mxu0 0.0
    %689 = vmatprep.subr.mxu0 0.0
    %690 = vmatpush1.msra.mxu0 0.0
    %691 = vmatprep.subr.mxu0 0.0
    %692 = vmatpush1.msra.mxu0 0.0
    %693 = vmatprep.subr.mxu0 0.0
    %694 = vmatpush1.msra.mxu0 0.0
    %695 = vmatprep.subr.mxu0 0.0
    %696 = vmatpush1.msra.mxu0 0.0
    %697 = vmatprep.subr.mxu0 0.0
    %698 = vmatpush1.msra.mxu0 0.0
    %699 = vmatprep.subr.mxu0 0.0
    %700 = vmatpush1.msra.mxu0 0.0
    %701 = vmatprep.subr.mxu0 0.0
    %702 = vmatpush1.msra.mxu0 0.0
    %703 = vmatprep.subr.mxu0 0.0
    %704 = vmatpush1.msra.mxu0 0.0
    %705 = vmatprep.subr.mxu0 0.0
    %706 = vmatpush1.msra.mxu0 0.0
    %707 = vmatprep.mubr.f32.mxu0 0.0
    %v708 = vand.u32 %v487, 4294901760
    %v709 = vsub.f32 %v487, %v708
    %710 = vmatmul.mubr.f32.gmra.mrb[0].mxu0 %v709
    %v711 = vpop.f32.mrb[0].mxu0
    %v712 = vadd.f32 %v638, %v711
    %v713 = vpop.f32.mrb[0].mxu0
    %714 = vdwg.mxu0
    %715 = vmatprep.subr.mxu0 0.0
    %v716 = vand.u32 %v28, 4294901760
    %717 = vmatpush1.msra.mxu0 %v716
    %718 = vmatprep.subr.mxu0 0.0
    %719 = vmatpush1.msra.mxu0 0.0
    %720 = vmatprep.subr.mxu0 0.0
    %721 = vmatpush1.msra.mxu0 0.0
    %722 = vmatprep.subr.mxu0 0.0
    %723 = vmatpush1.msra.mxu0 0.0
    %724 = vmatprep.subr.mxu0 0.0
    %725 = vmatpush1.msra.mxu0 0.0
    %726 = vmatprep.subr.mxu0 0.0
    %727 = vmatpush1.msra.mxu0 0.0
    %728 = vmatprep.subr.mxu0 0.0
    %729 = vmatpush1.msra.mxu0 0.0
    %730 = vmatprep.subr.mxu0 0.0
    %731 = vmatpush1.msra.mxu0 0.0
    %732 = vmatprep.subr.mxu0 0.0
    %733 = vmatpush1.msra.mxu0 0.0
    %734 = vmatprep.subr.mxu0 0.0
    %735 = vmatpush1.msra.mxu0 0.0
    %736 = vmatprep.subr.mxu0 0.0
    %737 = vmatpush1.msra.mxu0 0.0
    %738 = vmatprep.subr.mxu0 0.0
    %739 = vmatpush1.msra.mxu0 0.0
    %740 = vmatprep.subr.mxu0 0.0
    %741 = vmatpush1.msra.mxu0 0.0
    %742 = vmatprep.subr.mxu0 0.0
    %743 = vmatpush1.msra.mxu0 0.0
    %744 = vmatprep.subr.mxu0 0.0
    %745 = vmatpush1.msra.mxu0 0.0
    %746 = vmatprep.subr.mxu0 0.0
    %747 = vmatpush1.msra.mxu0 0.0
    %748 = vmatprep.subr.mxu0 0.0
    %749 = vmatpush1.msra.mxu0 0.0
    %750 = vmatprep.subr.mxu0 0.0
    %751 = vmatpush1.msra.mxu0 0.0
    %752 = vmatprep.subr.mxu0 0.0
    %753 = vmatpush1.msra.mxu0 0.0
    %754 = vmatprep.subr.mxu0 0.0
    %755 = vmatpush1.msra.mxu0 0.0
    %756 = vmatprep.subr.mxu0 0.0
    %757 = vmatpush1.msra.mxu0 0.0
    %758 = vmatprep.subr.mxu0 0.0
    %759 = vmatpush1.msra.mxu0 0.0
    %760 = vmatprep.subr.mxu0 0.0
    %761 = vmatpush1.msra.mxu0 0.0
    %762 = vmatprep.subr.mxu0 0.0
    %763 = vmatpush1.msra.mxu0 0.0
    %764 = vmatprep.subr.mxu0 0.0
    %765 = vmatpush1.msra.mxu0 0.0
    %766 = vmatprep.subr.mxu0 0.0
    %767 = vmatpush1.msra.mxu0 0.0
    %768 = vmatprep.subr.mxu0 0.0
    %769 = vmatpush1.msra.mxu0 0.0
    %770 = vmatprep.subr.mxu0 0.0
    %771 = vmatpush1.msra.mxu0 0.0
    %772 = vmatprep.subr.mxu0 0.0
    %773 = vmatpush1.msra.mxu0 0.0
    %774 = vmatprep.subr.mxu0 0.0
    %775 = vmatpush1.msra.mxu0 0.0
    %776 = vmatprep.subr.mxu0 0.0
    %777 = vmatpush1.msra.mxu0 0.0
    %778 = vmatprep.subr.mxu0 0.0
    %779 = vmatpush1.msra.mxu0 0.0
    %780 = vmatprep.mubr.f32.mxu0 0.0
    %v781 = vand.u32 %v487, 4294901760
    %v782 = vsub.f32 %v487, %v781
    %v783 = vand.u32 %v782, 4294901760
    %784 = vmatmul.mubr.f32.gmra.mrb[0].mxu0 %v783
    %v785 = vpop.f32.mrb[0].mxu0
    %v786 = vadd.f32 %v712, %v785
    %v787 = vpop.f32.mrb[0].mxu0
    %788 = vdwg.mxu0
    %789 = vmatprep.subr.mxu0 0.0
    %v790 = vand.u32 %v28, 4294901760
    %v791 = vsub.f32 %v28, %v790
    %v792 = vand.u32 %v791, 4294901760
    %793 = vmatpush1.msra.mxu0 %v792
    %794 = vmatprep.subr.mxu0 0.0
    %795 = vmatpush1.msra.mxu0 0.0
    %796 = vmatprep.subr.mxu0 0.0
    %797 = vmatpush1.msra.mxu0 0.0
    %798 = vmatprep.subr.mxu0 0.0
    %799 = vmatpush1.msra.mxu0 0.0
    %800 = vmatprep.subr.mxu0 0.0
    %801 = vmatpush1.msra.mxu0 0.0
    %802 = vmatprep.subr.mxu0 0.0
    %803 = vmatpush1.msra.mxu0 0.0
    %804 = vmatprep.subr.mxu0 0.0
    %805 = vmatpush1.msra.mxu0 0.0
    %806 = vmatprep.subr.mxu0 0.0
    %807 = vmatpush1.msra.mxu0 0.0
    %808 = vmatprep.subr.mxu0 0.0
    %809 = vmatpush1.msra.mxu0 0.0
    %810 = vmatprep.subr.mxu0 0.0
    %811 = vmatpush1.msra.mxu0 0.0
    %812 = vmatprep.subr.mxu0 0.0
    %813 = vmatpush1.msra.mxu0 0.0
    %814 = vmatprep.subr.mxu0 0.0
    %815 = vmatpush1.msra.mxu0 0.0
    %816 = vmatprep.subr.mxu0 0.0
    %817 = vmatpush1.msra.mxu0 0.0
    %818 = vmatprep.subr.mxu0 0.0
    %819 = vmatpush1.msra.mxu0 0.0
    %820 = vmatprep.subr.mxu0 0.0
    %821 = vmatpush1.msra.mxu0 0.0
    %822 = vmatprep.subr.mxu0 0.0
    %823 = vmatpush1.msra.mxu0 0.0
    %824 = vmatprep.subr.mxu0 0.0
    %825 = vmatpush1.msra.mxu0 0.0
    %826 = vmatprep.subr.mxu0 0.0
    %827 = vmatpush1.msra.mxu0 0.0
    %828 = vmatprep.subr.mxu0 0.0
    %829 = vmatpush1.msra.mxu0 0.0
    %830 = vmatprep.subr.mxu0 0.0
    %831 = vmatpush1.msra.mxu0 0.0
    %832 = vmatprep.subr.mxu0 0.0
    %833 = vmatpush1.msra.mxu0 0.0
    %834 = vmatprep.subr.mxu0 0.0
    %835 = vmatpush1.msra.mxu0 0.0
    %836 = vmatprep.subr.mxu0 0.0
    %837 = vmatpush1.msra.mxu0 0.0
    %838 = vmatprep.subr.mxu0 0.0
    %839 = vmatpush1.msra.mxu0 0.0
    %840 = vmatprep.subr.mxu0 0.0
    %841 = vmatpush1.msra.mxu0 0.0
    %842 = vmatprep.subr.mxu0 0.0
    %843 = vmatpush1.msra.mxu0 0.0
    %844 = vmatprep.subr.mxu0 0.0
    %845 = vmatpush1.msra.mxu0 0.0
    %846 = vmatprep.subr.mxu0 0.0
    %847 = vmatpush1.msra.mxu0 0.0
    %848 = vmatprep.subr.mxu0 0.0
    %849 = vmatpush1.msra.mxu0 0.0
    %850 = vmatprep.subr.mxu0 0.0
    %851 = vmatpush1.msra.mxu0 0.0
    %852 = vmatprep.subr.mxu0 0.0
    %853 = vmatpush1.msra.mxu0 0.0
    %854 = vmatprep.subr.mxu0 0.0
    %855 = vmatpush1.msra.mxu0 0.0
    %856 = vmatprep.mubr.f32.mxu0 0.0
    %v857 = vand.u32 %v487, 4294901760
    %858 = vmatmul.mubr.f32.gmra.mrb[0].mxu0 %v857
    %v859 = vpop.f32.mrb[0].mxu0
    %v860 = vadd.f32 %v786, %v859
    %v861 = vpop.f32.mrb[0].mxu0
    %862 = vdwg.mxu0
    %863 = vmatprep.subr.mxu0 0.0
    %v864 = vand.u32 %v28, 4294901760
    %865 = vmatpush1.msra.mxu0 %v864
    %866 = vmatprep.subr.mxu0 0.0
    %867 = vmatpush1.msra.mxu0 0.0
    %868 = vmatprep.subr.mxu0 0.0
    %869 = vmatpush1.msra.mxu0 0.0
    %870 = vmatprep.subr.mxu0 0.0
    %871 = vmatpush1.msra.mxu0 0.0
    %872 = vmatprep.subr.mxu0 0.0
    %873 = vmatpush1.msra.mxu0 0.0
    %874 = vmatprep.subr.mxu0 0.0
    %875 = vmatpush1.msra.mxu0 0.0
    %876 = vmatprep.subr.mxu0 0.0
    %877 = vmatpush1.msra.mxu0 0.0
    %878 = vmatprep.subr.mxu0 0.0
    %879 = vmatpush1.msra.mxu0 0.0
    %880 = vmatprep.subr.mxu0 0.0
    %881 = vmatpush1.msra.mxu0 0.0
    %882 = vmatprep.subr.mxu0 0.0
    %883 = vmatpush1.msra.mxu0 0.0
    %884 = vmatprep.subr.mxu0 0.0
    %885 = vmatpush1.msra.mxu0 0.0
    %886 = vmatprep.subr.mxu0 0.0
    %887 = vmatpush1.msra.mxu0 0.0
    %888 = vmatprep.subr.mxu0 0.0
    %889 = vmatpush1.msra.mxu0 0.0
    %890 = vmatprep.subr.mxu0 0.0
    %891 = vmatpush1.msra.mxu0 0.0
    %892 = vmatprep.subr.mxu0 0.0
    %893 = vmatpush1.msra.mxu0 0.0
    %894 = vmatprep.subr.mxu0 0.0
    %895 = vmatpush1.msra.mxu0 0.0
    %896 = vmatprep.subr.mxu0 0.0
    %897 = vmatpush1.msra.mxu0 0.0
    %898 = vmatprep.subr.mxu0 0.0
    %899 = vmatpush1.msra.mxu0 0.0
    %900 = vmatprep.subr.mxu0 0.0
    %901 = vmatpush1.msra.mxu0 0.0
    %902 = vmatprep.subr.mxu0 0.0
    %903 = vmatpush1.msra.mxu0 0.0
    %904 = vmatprep.subr.mxu0 0.0
    %905 = vmatpush1.msra.mxu0 0.0
    %906 = vmatprep.subr.mxu0 0.0
    %907 = vmatpush1.msra.mxu0 0.0
    %908 = vmatprep.subr.mxu0 0.0
    %909 = vmatpush1.msra.mxu0 0.0
    %910 = vmatprep.subr.mxu0 0.0
    %911 = vmatpush1.msra.mxu0 0.0
    %912 = vmatprep.subr.mxu0 0.0
    %913 = vmatpush1.msra.mxu0 0.0
    %914 = vmatprep.subr.mxu0 0.0
    %915 = vmatpush1.msra.mxu0 0.0
    %916 = vmatprep.subr.mxu0 0.0
    %917 = vmatpush1.msra.mxu0 0.0
    %918 = vmatprep.subr.mxu0 0.0
    %919 = vmatpush1.msra.mxu0 0.0
    %920 = vmatprep.subr.mxu0 0.0
    %921 = vmatpush1.msra.mxu0 0.0
    %922 = vmatprep.subr.mxu0 0.0
    %923 = vmatpush1.msra.mxu0 0.0
    %924 = vmatprep.subr.mxu0 0.0
    %925 = vmatpush1.msra.mxu0 0.0
    %926 = vmatprep.subr.mxu0 0.0
    %927 = vmatpush1.msra.mxu0 0.0
    %928 = vmatprep.mubr.f32.mxu0 0.0
    %v929 = vand.u32 %v487, 4294901760
    %930 = vmatmul.mubr.f32.gmra.mrb[0].mxu0 %v929
    %v931 = vpop.f32.mrb[0].mxu0
    %v932 = vadd.f32 %v860, %v931
    %v933 = vpop.f32.mrb[0].mxu0
    %934 = vdwg.mxu0
    %v935 = vld [vmem:[%s4] sm:$0x1]
    %v937 = vlaneseq
    %v938 = vshrl.u32 %v937, 7
    %v939 = vsub.s32 0, %v938
    %v940 = vrot.slane %v935, %v939
    %v942 = vadd.f32 %v932, %v940
    %v943 = vmax.f32 %v942, 0.0
    %v944 = vld [vmem:[%s5] sm:$0xff]
    %v945 = vld [vmem:[%s5 + $0x8] sm:$0xff]
    %v946 = vld [vmem:[%s5 + $0x10] sm:$0xff]
    %v947 = vld [vmem:[%s5 + $0x18] sm:$0xff]
    %v948 = vld [vmem:[%s5 + $0x20] sm:$0xff]
    %v949 = vld [vmem:[%s5 + $0x28] sm:$0xff]
    %v950 = vld [vmem:[%s5 + $0x30] sm:$0xff]
    %v951 = vld [vmem:[%s5 + $0x38] sm:$0xff]
    %v952 = vld [vmem:[%s6] sm:$0x1]
    %v954 = vlaneseq
    %v955 = vshrl.u32 %v954, 7
    %v956 = vsub.s32 0, %v955
    %v957 = vrot.slane %v952, %v956
    %vm959 = vcmask 523264
    %v961 = vsel %vm959, %v943, 0
    %963 = vmatprep.subr.mxu0 0.0
    %v964 = vand.u32 %v944, 4294901760
    %965 = vmatpush1.msra.mxu0 %v964
    %966 = vmatprep.subr.mxu0 0.0
    %v967 = vand.u32 %v945, 4294901760
    %968 = vmatpush1.msra.mxu0 %v967
    %969 = vmatprep.subr.mxu0 0.0
    %v970 = vand.u32 %v946, 4294901760
    %971 = vmatpush1.msra.mxu0 %v970
    %972 = vmatprep.subr.mxu0 0.0
    %v973 = vand.u32 %v947, 4294901760
    %974 = vmatpush1.msra.mxu0 %v973
    %975 = vmatprep.subr.mxu0 0.0
    %v976 = vand.u32 %v948, 4294901760
    %977 = vmatpush1.msra.mxu0 %v976
    %978 = vmatprep.subr.mxu0 0.0
    %v979 = vand.u32 %v949, 4294901760
    %980 = vmatpush1.msra.mxu0 %v979
    %981 = vmatprep.subr.mxu0 0.0
    %v982 = vand.u32 %v950, 4294901760
    %983 = vmatpush1.msra.mxu0 %v982
    %984 = vmatprep.subr.mxu0 0.0
    %v985 = vand.u32 %v951, 4294901760
    %986 = vmatpush1.msra.mxu0 %v985
    %987 = vmatprep.subr.mxu0 0.0
    %988 = vmatpush1.msra.mxu0 0.0
    %989 = vmatprep.subr.mxu0 0.0
    %990 = vmatpush1.msra.mxu0 0.0
    %991 = vmatprep.subr.mxu0 0.0
    %992 = vmatpush1.msra.mxu0 0.0
    %993 = vmatprep.subr.mxu0 0.0
    %994 = vmatpush1.msra.mxu0 0.0
    %995 = vmatprep.subr.mxu0 0.0
    %996 = vmatpush1.msra.mxu0 0.0
    %997 = vmatprep.subr.mxu0 0.0
    %998 = vmatpush1.msra.mxu0 0.0
    %999 = vmatprep.subr.mxu0 0.0
    %1000 = vmatpush1.msra.mxu0 0.0
    %1001 = vmatprep.subr.mxu0 0.0
    %1002 = vmatpush1.msra.mxu0 0.0
    %1003 = vmatprep.subr.mxu0 0.0
    %1004 = vmatpush1.msra.mxu0 0.0
    %1005 = vmatprep.subr.mxu0 0.0
    %1006 = vmatpush1.msra.mxu0 0.0
    %1007 = vmatprep.subr.mxu0 0.0
    %1008 = vmatpush1.msra.mxu0 0.0
    %1009 = vmatprep.subr.mxu0 0.0
    %1010 = vmatpush1.msra.mxu0 0.0
    %1011 = vmatprep.subr.mxu0 0.0
    %1012 = vmatpush1.msra.mxu0 0.0
    %1013 = vmatprep.subr.mxu0 0.0
    %1014 = vmatpush1.msra.mxu0 0.0
    %1015 = vmatprep.subr.mxu0 0.0
    %1016 = vmatpush1.msra.mxu0 0.0
    %1017 = vmatprep.subr.mxu0 0.0
    %1018 = vmatpush1.msra.mxu0 0.0
    %1019 = vmatprep.subr.mxu0 0.0
    %1020 = vmatpush1.msra.mxu0 0.0
    %1021 = vmatprep.subr.mxu0 0.0
    %1022 = vmatpush1.msra.mxu0 0.0
    %1023 = vmatprep.subr.mxu0 0.0
    %1024 = vmatpush1.msra.mxu0 0.0
    %1025 = vmatprep.subr.mxu0 0.0
    %1026 = vmatpush1.msra.mxu0 0.0
    %1027 = vmatprep.subr.mxu0 0.0
    %1028 = vmatpush1.msra.mxu0 0.0
    %1029 = vmatprep.subr.mxu0 0.0
    %1030 = vmatpush1.msra.mxu0 0.0
    %1031 = vmatprep.subr.mxu0 0.0
    %1032 = vmatpush1.msra.mxu0 0.0
    %1033 = vmatprep.subr.mxu0 0.0
    %1034 = vmatpush1.msra.mxu0 0.0
    %1035 = vmatprep.mubr.f32.mxu0 0.0
    %v1036 = vand.u32 %v961, 4294901760
    %v1037 = vsub.f32 %v961, %v1036
    %v1038 = vand.u32 %v1037, 4294901760
    %v1039 = vsub.f32 %v1037, %v1038
    %v1040 = vand.u32 %v1039, 4294901760
    %1041 = vmatmul.mubr.f32.gmra.mrb[0].mxu0 %v1040
    %v1042 = vpop.f32.mrb[0].mxu0
    %v1043 = vadd.f32 %v957, %v1042
    %v1044 = vpop.f32.mrb[0].mxu0
    %1045 = vdwg.mxu0
    %1046 = vmatprep.subr.mxu0 0.0
    %v1047 = vand.u32 %v944, 4294901760
    %v1048 = vsub.f32 %v944, %v1047
    %v1049 = vand.u32 %v1048, 4294901760
    %v1050 = vsub.f32 %v1048, %v1049
    %v1051 = vand.u32 %v1050, 4294901760
    %1052 = vmatpush1.msra.mxu0 %v1051
    %1053 = vmatprep.subr.mxu0 0.0
    %v1054 = vand.u32 %v945, 4294901760
    %v1055 = vsub.f32 %v945, %v1054
    %v1056 = vand.u32 %v1055, 4294901760
    %v1057 = vsub.f32 %v1055, %v1056
    %v1058 = vand.u32 %v1057, 4294901760
    %1059 = vmatpush1.msra.mxu0 %v1058
    %1060 = vmatprep.subr.mxu0 0.0
    %v1061 = vand.u32 %v946, 4294901760
    %v1062 = vsub.f32 %v946, %v1061
    %v1063 = vand.u32 %v1062, 4294901760
    %v1064 = vsub.f32 %v1062, %v1063
    %v1065 = vand.u32 %v1064, 4294901760
    %1066 = vmatpush1.msra.mxu0 %v1065
    %1067 = vmatprep.subr.mxu0 0.0
    %v1068 = vand.u32 %v947, 4294901760
    %v1069 = vsub.f32 %v947, %v1068
    %v1070 = vand.u32 %v1069, 4294901760
    %v1071 = vsub.f32 %v1069, %v1070
    %v1072 = vand.u32 %v1071, 4294901760
    %1073 = vmatpush1.msra.mxu0 %v1072
    %1074 = vmatprep.subr.mxu0 0.0
    %v1075 = vand.u32 %v948, 4294901760
    %v1076 = vsub.f32 %v948, %v1075
    %v1077 = vand.u32 %v1076, 4294901760
    %v1078 = vsub.f32 %v1076, %v1077
    %v1079 = vand.u32 %v1078, 4294901760
    %1080 = vmatpush1.msra.mxu0 %v1079
    %1081 = vmatprep.subr.mxu0 0.0
    %v1082 = vand.u32 %v949, 4294901760
    %v1083 = vsub.f32 %v949, %v1082
    %v1084 = vand.u32 %v1083, 4294901760
    %v1085 = vsub.f32 %v1083, %v1084
    %v1086 = vand.u32 %v1085, 4294901760
    %1087 = vmatpush1.msra.mxu0 %v1086
    %1088 = vmatprep.subr.mxu0 0.0
    %v1089 = vand.u32 %v950, 4294901760
    %v1090 = vsub.f32 %v950, %v1089
    %v1091 = vand.u32 %v1090, 4294901760
    %v1092 = vsub.f32 %v1090, %v1091
    %v1093 = vand.u32 %v1092, 4294901760
    %1094 = vmatpush1.msra.mxu0 %v1093
    %1095 = vmatprep.subr.mxu0 0.0
    %v1096 = vand.u32 %v951, 4294901760
    %v1097 = vsub.f32 %v951, %v1096
    %v1098 = vand.u32 %v1097, 4294901760
    %v1099 = vsub.f32 %v1097, %v1098
    %v1100 = vand.u32 %v1099, 4294901760
    %1101 = vmatpush1.msra.mxu0 %v1100
    %1102 = vmatprep.subr.mxu0 0.0
    %1103 = vmatpush1.msra.mxu0 0.0
    %1104 = vmatprep.subr.mxu0 0.0
    %1105 = vmatpush1.msra.mxu0 0.0
    %1106 = vmatprep.subr.mxu0 0.0
    %1107 = vmatpush1.msra.mxu0 0.0
    %1108 = vmatprep.subr.mxu0 0.0
    %1109 = vmatpush1.msra.mxu0 0.0
    %1110 = vmatprep.subr.mxu0 0.0
    %1111 = vmatpush1.msra.mxu0 0.0
    %1112 = vmatprep.subr.mxu0 0.0
    %1113 = vmatpush1.msra.mxu0 0.0
    %1114 = vmatprep.subr.mxu0 0.0
    %1115 = vmatpush1.msra.mxu0 0.0
    %1116 = vmatprep.subr.mxu0 0.0
    %1117 = vmatpush1.msra.mxu0 0.0
    %1118 = vmatprep.subr.mxu0 0.0
    %1119 = vmatpush1.msra.mxu0 0.0
    %1120 = vmatprep.subr.mxu0 0.0
    %1121 = vmatpush1.msra.mxu0 0.0
    %1122 = vmatprep.subr.mxu0 0.0
    %1123 = vmatpush1.msra.mxu0 0.0
    %1124 = vmatprep.subr.mxu0 0.0
    %1125 = vmatpush1.msra.mxu0 0.0
    %1126 = vmatprep.subr.mxu0 0.0
    %1127 = vmatpush1.msra.mxu0 0.0
    %1128 = vmatprep.subr.mxu0 0.0
    %1129 = vmatpush1.msra.mxu0 0.0
    %1130 = vmatprep.subr.mxu0 0.0
    %1131 = vmatpush1.msra.mxu0 0.0
    %1132 = vmatprep.subr.mxu0 0.0
    %1133 = vmatpush1.msra.mxu0 0.0
    %1134 = vmatprep.subr.mxu0 0.0
    %1135 = vmatpush1.msra.mxu0 0.0
    %1136 = vmatprep.subr.mxu0 0.0
    %1137 = vmatpush1.msra.mxu0 0.0
    %1138 = vmatprep.subr.mxu0 0.0
    %1139 = vmatpush1.msra.mxu0 0.0
    %1140 = vmatprep.subr.mxu0 0.0
    %1141 = vmatpush1.msra.mxu0 0.0
    %1142 = vmatprep.subr.mxu0 0.0
    %1143 = vmatpush1.msra.mxu0 0.0
    %1144 = vmatprep.subr.mxu0 0.0
    %1145 = vmatpush1.msra.mxu0 0.0
    %1146 = vmatprep.subr.mxu0 0.0
    %1147 = vmatpush1.msra.mxu0 0.0
    %1148 = vmatprep.subr.mxu0 0.0
    %1149 = vmatpush1.msra.mxu0 0.0
    %1150 = vmatprep.mubr.f32.mxu0 0.0
    %v1151 = vand.u32 %v961, 4294901760
    %1152 = vmatmul.mubr.f32.gmra.mrb[0].mxu0 %v1151
    %v1153 = vpop.f32.mrb[0].mxu0
    %v1154 = vadd.f32 %v1043, %v1153
    %v1155 = vpop.f32.mrb[0].mxu0
    %1156 = vdwg.mxu0
    %1157 = vmatprep.subr.mxu0 0.0
    %v1158 = vand.u32 %v944, 4294901760
    %v1159 = vsub.f32 %v944, %v1158
    %1160 = vmatpush1.msra.mxu0 %v1159
    %1161 = vmatprep.subr.mxu0 0.0
    %v1162 = vand.u32 %v945, 4294901760
    %v1163 = vsub.f32 %v945, %v1162
    %1164 = vmatpush1.msra.mxu0 %v1163
    %1165 = vmatprep.subr.mxu0 0.0
    %v1166 = vand.u32 %v946, 4294901760
    %v1167 = vsub.f32 %v946, %v1166
    %1168 = vmatpush1.msra.mxu0 %v1167
    %1169 = vmatprep.subr.mxu0 0.0
    %v1170 = vand.u32 %v947, 4294901760
    %v1171 = vsub.f32 %v947, %v1170
    %1172 = vmatpush1.msra.mxu0 %v1171
    %1173 = vmatprep.subr.mxu0 0.0
    %v1174 = vand.u32 %v948, 4294901760
    %v1175 = vsub.f32 %v948, %v1174
    %1176 = vmatpush1.msra.mxu0 %v1175
    %1177 = vmatprep.subr.mxu0 0.0
    %v1178 = vand.u32 %v949, 4294901760
    %v1179 = vsub.f32 %v949, %v1178
    %1180 = vmatpush1.msra.mxu0 %v1179
    %1181 = vmatprep.subr.mxu0 0.0
    %v1182 = vand.u32 %v950, 4294901760
    %v1183 = vsub.f32 %v950, %v1182
    %1184 = vmatpush1.msra.mxu0 %v1183
    %1185 = vmatprep.subr.mxu0 0.0
    %v1186 = vand.u32 %v951, 4294901760
    %v1187 = vsub.f32 %v951, %v1186
    %1188 = vmatpush1.msra.mxu0 %v1187
    %1189 = vmatprep.subr.mxu0 0.0
    %1190 = vmatpush1.msra.mxu0 0.0
    %1191 = vmatprep.subr.mxu0 0.0
    %1192 = vmatpush1.msra.mxu0 0.0
    %1193 = vmatprep.subr.mxu0 0.0
    %1194 = vmatpush1.msra.mxu0 0.0
    %1195 = vmatprep.subr.mxu0 0.0
    %1196 = vmatpush1.msra.mxu0 0.0
    %1197 = vmatprep.subr.mxu0 0.0
    %1198 = vmatpush1.msra.mxu0 0.0
    %1199 = vmatprep.subr.mxu0 0.0
    %1200 = vmatpush1.msra.mxu0 0.0
    %1201 = vmatprep.subr.mxu0 0.0
    %1202 = vmatpush1.msra.mxu0 0.0
    %1203 = vmatprep.subr.mxu0 0.0
    %1204 = vmatpush1.msra.mxu0 0.0
    %1205 = vmatprep.subr.mxu0 0.0
    %1206 = vmatpush1.msra.mxu0 0.0
    %1207 = vmatprep.subr.mxu0 0.0
    %1208 = vmatpush1.msra.mxu0 0.0
    %1209 = vmatprep.subr.mxu0 0.0
    %1210 = vmatpush1.msra.mxu0 0.0
    %1211 = vmatprep.subr.mxu0 0.0
    %1212 = vmatpush1.msra.mxu0 0.0
    %1213 = vmatprep.subr.mxu0 0.0
    %1214 = vmatpush1.msra.mxu0 0.0
    %1215 = vmatprep.subr.mxu0 0.0
    %1216 = vmatpush1.msra.mxu0 0.0
    %1217 = vmatprep.subr.mxu0 0.0
    %1218 = vmatpush1.msra.mxu0 0.0
    %1219 = vmatprep.subr.mxu0 0.0
    %1220 = vmatpush1.msra.mxu0 0.0
    %1221 = vmatprep.subr.mxu0 0.0
    %1222 = vmatpush1.msra.mxu0 0.0
    %1223 = vmatprep.subr.mxu0 0.0
    %1224 = vmatpush1.msra.mxu0 0.0
    %1225 = vmatprep.subr.mxu0 0.0
    %1226 = vmatpush1.msra.mxu0 0.0
    %1227 = vmatprep.subr.mxu0 0.0
    %1228 = vmatpush1.msra.mxu0 0.0
    %1229 = vmatprep.subr.mxu0 0.0
    %1230 = vmatpush1.msra.mxu0 0.0
    %1231 = vmatprep.subr.mxu0 0.0
    %1232 = vmatpush1.msra.mxu0 0.0
    %1233 = vmatprep.subr.mxu0 0.0
    %1234 = vmatpush1.msra.mxu0 0.0
    %1235 = vmatprep.subr.mxu0 0.0
    %1236 = vmatpush1.msra.mxu0 0.0
    %1237 = vmatprep.mubr.f32.mxu0 0.0
    %v1238 = vand.u32 %v961, 4294901760
    %v1239 = vsub.f32 %v961, %v1238
    %1240 = vmatmul.mubr.f32.gmra.mrb[0].mxu0 %v1239
    %v1241 = vpop.f32.mrb[0].mxu0
    %v1242 = vadd.f32 %v1154, %v1241
    %v1243 = vpop.f32.mrb[0].mxu0
    %1244 = vdwg.mxu0
    %1245 = vmatprep.subr.mxu0 0.0
    %v1246 = vand.u32 %v944, 4294901760
    %1247 = vmatpush1.msra.mxu0 %v1246
    %1248 = vmatprep.subr.mxu0 0.0
    %v1249 = vand.u32 %v945, 4294901760
    %1250 = vmatpush1.msra.mxu0 %v1249
    %1251 = vmatprep.subr.mxu0 0.0
    %v1252 = vand.u32 %v946, 4294901760
    %1253 = vmatpush1.msra.mxu0 %v1252
    %1254 = vmatprep.subr.mxu0 0.0
    %v1255 = vand.u32 %v947, 4294901760
    %1256 = vmatpush1.msra.mxu0 %v1255
    %1257 = vmatprep.subr.mxu0 0.0
    %v1258 = vand.u32 %v948, 4294901760
    %1259 = vmatpush1.msra.mxu0 %v1258
    %1260 = vmatprep.subr.mxu0 0.0
    %v1261 = vand.u32 %v949, 4294901760
    %1262 = vmatpush1.msra.mxu0 %v1261
    %1263 = vmatprep.subr.mxu0 0.0
    %v1264 = vand.u32 %v950, 4294901760
    %1265 = vmatpush1.msra.mxu0 %v1264
    %1266 = vmatprep.subr.mxu0 0.0
    %v1267 = vand.u32 %v951, 4294901760
    %1268 = vmatpush1.msra.mxu0 %v1267
    %1269 = vmatprep.subr.mxu0 0.0
    %1270 = vmatpush1.msra.mxu0 0.0
    %1271 = vmatprep.subr.mxu0 0.0
    %1272 = vmatpush1.msra.mxu0 0.0
    %1273 = vmatprep.subr.mxu0 0.0
    %1274 = vmatpush1.msra.mxu0 0.0
    %1275 = vmatprep.subr.mxu0 0.0
    %1276 = vmatpush1.msra.mxu0 0.0
    %1277 = vmatprep.subr.mxu0 0.0
    %1278 = vmatpush1.msra.mxu0 0.0
    %1279 = vmatprep.subr.mxu0 0.0
    %1280 = vmatpush1.msra.mxu0 0.0
    %1281 = vmatprep.subr.mxu0 0.0
    %1282 = vmatpush1.msra.mxu0 0.0
    %1283 = vmatprep.subr.mxu0 0.0
    %1284 = vmatpush1.msra.mxu0 0.0
    %1285 = vmatprep.subr.mxu0 0.0
    %1286 = vmatpush1.msra.mxu0 0.0
    %1287 = vmatprep.subr.mxu0 0.0
    %1288 = vmatpush1.msra.mxu0 0.0
    %1289 = vmatprep.subr.mxu0 0.0
    %1290 = vmatpush1.msra.mxu0 0.0
    %1291 = vmatprep.subr.mxu0 0.0
    %1292 = vmatpush1.msra.mxu0 0.0
    %1293 = vmatprep.subr.mxu0 0.0
    %1294 = vmatpush1.msra.mxu0 0.0
    %1295 = vmatprep.subr.mxu0 0.0
    %1296 = vmatpush1.msra.mxu0 0.0
    %1297 = vmatprep.subr.mxu0 0.0
    %1298 = vmatpush1.msra.mxu0 0.0
    %1299 = vmatprep.subr.mxu0 0.0
    %1300 = vmatpush1.msra.mxu0 0.0
    %1301 = vmatprep.subr.mxu0 0.0
    %1302 = vmatpush1.msra.mxu0 0.0
    %1303 = vmatprep.subr.mxu0 0.0
    %1304 = vmatpush1.msra.mxu0 0.0
    %1305 = vmatprep.subr.mxu0 0.0
    %1306 = vmatpush1.msra.mxu0 0.0
    %1307 = vmatprep.subr.mxu0 0.0
    %1308 = vmatpush1.msra.mxu0 0.0
    %1309 = vmatprep.subr.mxu0 0.0
    %1310 = vmatpush1.msra.mxu0 0.0
    %1311 = vmatprep.subr.mxu0 0.0
    %1312 = vmatpush1.msra.mxu0 0.0
    %1313 = vmatprep.subr.mxu0 0.0
    %1314 = vmatpush1.msra.mxu0 0.0
    %1315 = vmatprep.subr.mxu0 0.0
    %1316 = vmatpush1.msra.mxu0 0.0
    %1317 = vmatprep.mubr.f32.mxu0 0.0
    %v1318 = vand.u32 %v961, 4294901760
    %v1319 = vsub.f32 %v961, %v1318
    %v1320 = vand.u32 %v1319, 4294901760
    %1321 = vmatmul.mubr.f32.gmra.mrb[0].mxu0 %v1320
    %v1322 = vpop.f32.mrb[0].mxu0
    %v1323 = vadd.f32 %v1242, %v1322
    %v1324 = vpop.f32.mrb[0].mxu0
    %1325 = vdwg.mxu0
    %1326 = vmatprep.subr.mxu0 0.0
    %v1327 = vand.u32 %v944, 4294901760
    %v1328 = vsub.f32 %v944, %v1327
    %v1329 = vand.u32 %v1328, 4294901760
    %1330 = vmatpush1.msra.mxu0 %v1329
    %1331 = vmatprep.subr.mxu0 0.0
    %v1332 = vand.u32 %v945, 4294901760
    %v1333 = vsub.f32 %v945, %v1332
    %v1334 = vand.u32 %v1333, 4294901760
    %1335 = vmatpush1.msra.mxu0 %v1334
    %1336 = vmatprep.subr.mxu0 0.0
    %v1337 = vand.u32 %v946, 4294901760
    %v1338 = vsub.f32 %v946, %v1337
    %v1339 = vand.u32 %v1338, 4294901760
    %1340 = vmatpush1.msra.mxu0 %v1339
    %1341 = vmatprep.subr.mxu0 0.0
    %v1342 = vand.u32 %v947, 4294901760
    %v1343 = vsub.f32 %v947, %v1342
    %v1344 = vand.u32 %v1343, 4294901760
    %1345 = vmatpush1.msra.mxu0 %v1344
    %1346 = vmatprep.subr.mxu0 0.0
    %v1347 = vand.u32 %v948, 4294901760
    %v1348 = vsub.f32 %v948, %v1347
    %v1349 = vand.u32 %v1348, 4294901760
    %1350 = vmatpush1.msra.mxu0 %v1349
    %1351 = vmatprep.subr.mxu0 0.0
    %v1352 = vand.u32 %v949, 4294901760
    %v1353 = vsub.f32 %v949, %v1352
    %v1354 = vand.u32 %v1353, 4294901760
    %1355 = vmatpush1.msra.mxu0 %v1354
    %1356 = vmatprep.subr.mxu0 0.0
    %v1357 = vand.u32 %v950, 4294901760
    %v1358 = vsub.f32 %v950, %v1357
    %v1359 = vand.u32 %v1358, 4294901760
    %1360 = vmatpush1.msra.mxu0 %v1359
    %1361 = vmatprep.subr.mxu0 0.0
    %v1362 = vand.u32 %v951, 4294901760
    %v1363 = vsub.f32 %v951, %v1362
    %v1364 = vand.u32 %v1363, 4294901760
    %1365 = vmatpush1.msra.mxu0 %v1364
    %1366 = vmatprep.subr.mxu0 0.0
    %1367 = vmatpush1.msra.mxu0 0.0
    %1368 = vmatprep.subr.mxu0 0.0
    %1369 = vmatpush1.msra.mxu0 0.0
    %1370 = vmatprep.subr.mxu0 0.0
    %1371 = vmatpush1.msra.mxu0 0.0
    %1372 = vmatprep.subr.mxu0 0.0
    %1373 = vmatpush1.msra.mxu0 0.0
    %1374 = vmatprep.subr.mxu0 0.0
    %1375 = vmatpush1.msra.mxu0 0.0
    %1376 = vmatprep.subr.mxu0 0.0
    %1377 = vmatpush1.msra.mxu0 0.0
    %1378 = vmatprep.subr.mxu0 0.0
    %1379 = vmatpush1.msra.mxu0 0.0
    %1380 = vmatprep.subr.mxu0 0.0
    %1381 = vmatpush1.msra.mxu0 0.0
    %1382 = vmatprep.subr.mxu0 0.0
    %1383 = vmatpush1.msra.mxu0 0.0
    %1384 = vmatprep.subr.mxu0 0.0
    %1385 = vmatpush1.msra.mxu0 0.0
    %1386 = vmatprep.subr.mxu0 0.0
    %1387 = vmatpush1.msra.mxu0 0.0
    %1388 = vmatprep.subr.mxu0 0.0
    %1389 = vmatpush1.msra.mxu0 0.0
    %1390 = vmatprep.subr.mxu0 0.0
    %1391 = vmatpush1.msra.mxu0 0.0
    %1392 = vmatprep.subr.mxu0 0.0
    %1393 = vmatpush1.msra.mxu0 0.0
    %1394 = vmatprep.subr.mxu0 0.0
    %1395 = vmatpush1.msra.mxu0 0.0
    %1396 = vmatprep.subr.mxu0 0.0
    %1397 = vmatpush1.msra.mxu0 0.0
    %1398 = vmatprep.subr.mxu0 0.0
    %1399 = vmatpush1.msra.mxu0 0.0
    %1400 = vmatprep.subr.mxu0 0.0
    %1401 = vmatpush1.msra.mxu0 0.0
    %1402 = vmatprep.subr.mxu0 0.0
    %1403 = vmatpush1.msra.mxu0 0.0
    %1404 = vmatprep.subr.mxu0 0.0
    %1405 = vmatpush1.msra.mxu0 0.0
    %1406 = vmatprep.subr.mxu0 0.0
    %1407 = vmatpush1.msra.mxu0 0.0
    %1408 = vmatprep.subr.mxu0 0.0
    %1409 = vmatpush1.msra.mxu0 0.0
    %1410 = vmatprep.subr.mxu0 0.0
    %1411 = vmatpush1.msra.mxu0 0.0
    %1412 = vmatprep.subr.mxu0 0.0
    %1413 = vmatpush1.msra.mxu0 0.0
    %1414 = vmatprep.mubr.f32.mxu0 0.0
    %v1415 = vand.u32 %v961, 4294901760
    %1416 = vmatmul.mubr.f32.gmra.mrb[0].mxu0 %v1415
    %v1417 = vpop.f32.mrb[0].mxu0
    %v1418 = vadd.f32 %v1323, %v1417
    %v1419 = vpop.f32.mrb[0].mxu0
    %1420 = vdwg.mxu0
    %1421 = vmatprep.subr.mxu0 0.0
    %v1422 = vand.u32 %v944, 4294901760
    %1423 = vmatpush1.msra.mxu0 %v1422
    %1424 = vmatprep.subr.mxu0 0.0
    %v1425 = vand.u32 %v945, 4294901760
    %1426 = vmatpush1.msra.mxu0 %v1425
    %1427 = vmatprep.subr.mxu0 0.0
    %v1428 = vand.u32 %v946, 4294901760
    %1429 = vmatpush1.msra.mxu0 %v1428
    %1430 = vmatprep.subr.mxu0 0.0
    %v1431 = vand.u32 %v947, 4294901760
    %1432 = vmatpush1.msra.mxu0 %v1431
    %1433 = vmatprep.subr.mxu0 0.0
    %v1434 = vand.u32 %v948, 4294901760
    %1435 = vmatpush1.msra.mxu0 %v1434
    %1436 = vmatprep.subr.mxu0 0.0
    %v1437 = vand.u32 %v949, 4294901760
    %1438 = vmatpush1.msra.mxu0 %v1437
    %1439 = vmatprep.subr.mxu0 0.0
    %v1440 = vand.u32 %v950, 4294901760
    %1441 = vmatpush1.msra.mxu0 %v1440
    %1442 = vmatprep.subr.mxu0 0.0
    %v1443 = vand.u32 %v951, 4294901760
    %1444 = vmatpush1.msra.mxu0 %v1443
    %1445 = vmatprep.subr.mxu0 0.0
    %1446 = vmatpush1.msra.mxu0 0.0
    %1447 = vmatprep.subr.mxu0 0.0
    %1448 = vmatpush1.msra.mxu0 0.0
    %1449 = vmatprep.subr.mxu0 0.0
    %1450 = vmatpush1.msra.mxu0 0.0
    %1451 = vmatprep.subr.mxu0 0.0
    %1452 = vmatpush1.msra.mxu0 0.0
    %1453 = vmatprep.subr.mxu0 0.0
    %1454 = vmatpush1.msra.mxu0 0.0
    %1455 = vmatprep.subr.mxu0 0.0
    %1456 = vmatpush1.msra.mxu0 0.0
    %1457 = vmatprep.subr.mxu0 0.0
    %1458 = vmatpush1.msra.mxu0 0.0
    %1459 = vmatprep.subr.mxu0 0.0
    %1460 = vmatpush1.msra.mxu0 0.0
    %1461 = vmatprep.subr.mxu0 0.0
    %1462 = vmatpush1.msra.mxu0 0.0
    %1463 = vmatprep.subr.mxu0 0.0
    %1464 = vmatpush1.msra.mxu0 0.0
    %1465 = vmatprep.subr.mxu0 0.0
    %1466 = vmatpush1.msra.mxu0 0.0
    %1467 = vmatprep.subr.mxu0 0.0
    %1468 = vmatpush1.msra.mxu0 0.0
    %1469 = vmatprep.subr.mxu0 0.0
    %1470 = vmatpush1.msra.mxu0 0.0
    %1471 = vmatprep.subr.mxu0 0.0
    %1472 = vmatpush1.msra.mxu0 0.0
    %1473 = vmatprep.subr.mxu0 0.0
    %1474 = vmatpush1.msra.mxu0 0.0
    %1475 = vmatprep.subr.mxu0 0.0
    %1476 = vmatpush1.msra.mxu0 0.0
    %1477 = vmatprep.subr.mxu0 0.0
    %1478 = vmatpush1.msra.mxu0 0.0
    %1479 = vmatprep.subr.mxu0 0.0
    %1480 = vmatpush1.msra.mxu0 0.0
    %1481 = vmatprep.subr.mxu0 0.0
    %1482 = vmatpush1.msra.mxu0 0.0
    %1483 = vmatprep.subr.mxu0 0.0
    %1484 = vmatpush1.msra.mxu0 0.0
    %1485 = vmatprep.subr.mxu0 0.0
    %1486 = vmatpush1.msra.mxu0 0.0
    %1487 = vmatprep.subr.mxu0 0.0
    %1488 = vmatpush1.msra.mxu0 0.0
    %1489 = vmatprep.subr.mxu0 0.0
    %1490 = vmatpush1.msra.mxu0 0.0
    %1491 = vmatprep.subr.mxu0 0.0
    %1492 = vmatpush1.msra.mxu0 0.0
    %1493 = vmatprep.mubr.f32.mxu0 0.0
    %v1494 = vand.u32 %v961, 4294901760
    %1495 = vmatmul.mubr.f32.gmra.mrb[0].mxu0 %v1494
    %v1496 = vpop.f32.mrb[0].mxu0
    %v1497 = vadd.f32 %v1418, %v1496
    %v1498 = vpop.f32.mrb[0].mxu0
    %1499 = vdwg.mxu0
    %1500 = vst.msk [vmem:[#allocation2] sm:$0xff] %vm485, %v1497
    // Predicated region
    $region30: #{feedforward_nn.1} parent=1 // pred_check
      _
    $region31: #{feedforward_nn.1} parent=1 // pred_check_branch
      %1502 = sbr.rel (0) target = $region33
    $region32: #{feedforward_nn.1} parent=1 // pred_region
      %s1504 = ssub.s32 128, 128
      %1505 = vsyncadd [#allocation3], %s1504
      %s1507 = sshll.u32 [#allocation2], 4
      %s1508 = int_to_ptr.vmem [resolvable:$true] %s1507
      %1510 = dma.vmem_to_hbm [thread:$0]  %s1508, 128, %s7, [#allocation3]
    $region33: #{feedforward_nn.1} parent=1 // pred_fallthru
      _
    // Predicated region
    $region34: #{feedforward_nn.1} parent=1 // pred_check
      _
    $region35: #{feedforward_nn.1} parent=1 // pred_check_branch
      %1512 = sbr.rel (0) target = $region37
    $region36: #{feedforward_nn.1} parent=1 // pred_region
      %1513 = dma.done [#allocation3], 128
    $region37: #{feedforward_nn.1} parent=1 // pred_fallthru
      _
    %1514 = vsyncpa [#allocation3], 1

</llo_original>
